<compile_context>
chip_gen: v5e
topology: v5e:2x2
jax: 0.10.0
libtpu: 0.0.40
codegen_flags: <defaults>
</compile_context>

<pallas_src>
import functools

import jax
import jax.numpy as jnp
from jax import lax
from jax.experimental import pallas as pl
from jax.experimental.pallas import tpu as pltpu


# --------------------------------------------------------------------------
# Chip-adaptive tiling profile
# --------------------------------------------------------------------------
@functools.lru_cache(maxsize=1)
def _chip_profile():
    """Returns (row_tile, vmem_limit_bytes)."""
    try:
        info = pltpu.get_tpu_info()
        vmem = getattr(info, "vmem_capacity_bytes", None)
        if vmem is not None and vmem >= 96 * 1024 * 1024:
            return 512, 64 * 1024 * 1024          # v5e / v6e: 128 MiB VMEM
    except Exception:
        pass
    return 256, 32 * 1024 * 1024                  # v7x / unknown: stay tight


# --------------------------------------------------------------------------
# Row-tiled  y = act(x @ W + b)   (LSTM input projection, fused BN+4xMLP)
#   x: f32 (N, F), W: bf16 (F, M), b: f32 (1, M)
# --------------------------------------------------------------------------
def _matmul_bias_kernel(x_ref, w_ref, b_ref, o_ref, *, slope):
    y = jnp.dot(x_ref[...].astype(jnp.bfloat16), w_ref[...],
                preferred_element_type=jnp.float32) + b_ref[...]
    if slope is not None:                          # LeakyReLU
        y = jnp.where(y > 0.0, y, slope * y)
    o_ref[...] = y


def matmul_bias(x2d, w_bf, b_row, *, slope, tile_n, vmem):
    N, F = x2d.shape
    M = w_bf.shape[1]
    tn = min(tile_n, N)                            # N is a multiple of 8 (padded B)
    kernel = functools.partial(_matmul_bias_kernel, slope=slope)
    return pl.pallas_call(
        kernel,
        out_shape=jax.ShapeDtypeStruct((N, M), jnp.float32),
        grid=(pl.cdiv(N, tn),),
        in_specs=[pl.BlockSpec((tn, F), lambda i: (i, 0)),
                  pl.BlockSpec((F, M), lambda i: (0, 0)),
                  pl.BlockSpec((1, M), lambda i: (0, 0))],
        out_specs=pl.BlockSpec((tn, M), lambda i: (i, 0)),
        compiler_params=pltpu.CompilerParams(
            dimension_semantics=("parallel",), vmem_limit_bytes=vmem),
    )(x2d, w_bf, b_row)


# --------------------------------------------------------------------------
# Fused bidirectional LSTM recurrence.
# Input gates are precomputed (hoisted projection, columns [fwd 4H | bwd 4H],
# gate order (i, f, o, g)).  Both directions advance inside ONE loop: per step
# a single batched bf16 (2,B,H)x(2,H,4H) dot_general + wide activations.
# --------------------------------------------------------------------------
def _bilstm_rec_kernel(xp_ref, whh_ref, out_ref, h_sc, c_sc, *, hidden, seq):
    H = hidden
    h_sc[...] = jnp.zeros_like(h_sc)
    c_sc[...] = jnp.zeros_like(c_sc)

    def step(t, carry):
        tb = seq - 1 - t
        x_f = xp_ref[t]                                       # (Bp, 8H)
        x_b = xp_ref[tb]
        xs = jnp.stack([x_f[:, :4 * H], x_b[:, 4 * H:]])      # (2, Bp, 4H)
        hw = lax.dot_general(                                 # bf16 in, f32 acc
            h_sc[...].astype(jnp.bfloat16), whh_ref[...],
            (((2,), (1,)), ((0,), (0,))),
            preferred_element_type=jnp.float32)               # (2, Bp, 4H)
        gates = xs + hw
        # Full-width activations (EUP slot is otherwise idle), then slice.
        # TODO(synk): for H not a multiple of 128 these gate slices cut vreg
        # lane boundaries; pad the gate groups to 128 lanes for production H.
        sig = jax.nn.sigmoid(gates)
        tnh = jnp.tanh(gates)
        i_g = sig[..., 0:H]
        f_g = sig[..., H:2 * H]
        o_g = sig[..., 2 * H:3 * H]
        g_g = tnh[..., 3 * H:]
        c_new = f_g * c_sc[...] + i_g * g_g                   # f32 state
        h_new = o_g * jnp.tanh(c_new)
        c_sc[...] = c_new
        h_sc[...] = h_new
        out_ref[t, :, 0:H] = h_new[0]                         # forward half
        out_ref[tb, :, H:2 * H] = h_new[1]                    # backward half
        return carry

    lax.fori_loop(0, seq, step, 0)


def bilstm_recurrence(x_proj, whh_bf, *, hidden, vmem):
    """x_proj: (S, Bp, 8H) f32 precomputed input gates (+bias);
    whh_bf: (2, H, 4H) bf16.  Returns (S, Bp, 2H) f32 = [h_fwd | h_bwd]."""
    S, Bp, _ = x_proj.shape
    kernel = functools.partial(_bilstm_rec_kernel, hidden=hidden, seq=S)
    # TODO(synk): for long sequences keep x_proj / out in HBM (pl.ANY) and
    # double-buffer time chunks with make_async_copy (v7x has only 64 MiB VMEM).
    return pl.pallas_call(
        kernel,
        out_shape=jax.ShapeDtypeStruct((S, Bp, 2 * hidden), jnp.float32),
        scratch_shapes=[pltpu.VMEM((2, Bp, hidden), jnp.float32),
                        pltpu.VMEM((2, Bp, hidden), jnp.float32)],
        compiler_params=pltpu.CompilerParams(vmem_limit_bytes=vmem),
    )(x_proj, whh_bf)


# --------------------------------------------------------------------------
# Biaffine: score[b, o, j, i] = head[b,j] . Wm[o] . dep[b,i]
#                               + head[b,j] . w_hb[o]          (dep ones col)
#                               + w_db[o] . dep[b,i]           (head ones col)
#                               + w_c[o]                       (corner)
# grid=(B, n_out) -> one lane-dense (S, S) block per step; bias terms done
# in-kernel (no ones-column concats, K stays aligned).
# --------------------------------------------------------------------------
def _biaffine_kernel(dep_ref, head_ref, wm_ref, whb_ref, wdb_ref, wc_ref, out_ref):
    dep = dep_ref[0].astype(jnp.bfloat16)                     # (S, d1)
    head = head_ref[0].astype(jnp.bfloat16)                   # (S, d2)
    hw = jnp.dot(head, wm_ref[0],
                 preferred_element_type=jnp.float32)          # (S, d1)
    main = lax.dot_general(hw.astype(jnp.bfloat16), dep,
                           (((1,), (1,)), ((), ())),
                           preferred_element_type=jnp.float32)  # (S_head, S_dep)
    hb = jnp.dot(head, whb_ref[0],
                 preferred_element_type=jnp.float32)          # (S, 1)
    db = lax.dot_general(wdb_ref[0], dep, (((1,), (1,)), ((), ())),
                         preferred_element_type=jnp.float32)  # (1, S)
    out_ref[0, 0] = main + hb + db + wc_ref[0]


def biaffine(dep, head, w_main, w_hb, w_db, w_c, *, batch, vmem):
    """dep: (Bp, S, d1), head: (Bp, S, d2); weights pre-split per output
    channel.  Returns (batch, n_out, S, S) f32 (only the true batch rows)."""
    _, S, d1 = dep.shape
    d2 = head.shape[-1]
    n_out = w_main.shape[0]
    return pl.pallas_call(
        _biaffine_kernel,
        out_shape=jax.ShapeDtypeStruct((batch, n_out, S, S), jnp.float32),
        grid=(batch, n_out),
        in_specs=[pl.BlockSpec((1, S, d1), lambda b, o: (b, 0, 0)),
                  pl.BlockSpec((1, S, d2), lambda b, o: (b, 0, 0)),
                  pl.BlockSpec((1, d2, d1), lambda b, o: (o, 0, 0)),
                  pl.BlockSpec((1, d2, 1), lambda b, o: (o, 0, 0)),
                  pl.BlockSpec((1, 1, d1), lambda b, o: (o, 0, 0)),
                  pl.BlockSpec((1, 1, 1), lambda b, o: (o, 0, 0))],
        out_specs=pl.BlockSpec((1, 1, S, S), lambda b, o: (b, o, 0, 0)),
        compiler_params=pltpu.CompilerParams(
            dimension_semantics=("parallel", "parallel"),
            vmem_limit_bytes=vmem),
    )(dep, head, w_main, w_hb, w_db, w_c)


# --------------------------------------------------------------------------
# Full Parser forward (eval mode: all dropouts are identity)
# --------------------------------------------------------------------------
def parser_forward(params, word_ids, pos_ids, cfg):
    H = cfg["lstm_hidden"]
    B, S = word_ids.shape
    Bp = -(-B // 8) * 8                                       # pad batch to 8 sublanes
    tile_n, vmem = _chip_profile()

    # ids -> time-major, batch-padded (free: gather produces padded rows).
    wid = jnp.transpose(word_ids)
    pid = jnp.transpose(pos_ids)
    if Bp != B:
        wid = jnp.pad(wid, ((0, 0), (0, Bp - B)))
        pid = jnp.pad(pid, ((0, 0), (0, Bp - B)))

    x_word = jnp.take(params["embed"], wid, axis=0)           # (S, Bp, wd)
    x_pre = jnp.take(params["pre_embed"], wid, axis=0)
    x_pos = jnp.take(params["pos_embed"], pid, axis=0)
    h = jnp.concatenate([x_word + x_pre, x_pos], axis=2)      # (S, Bp, Din)

    # BiLSTM layers: hoisted input projection + fused bidirectional recurrence.
    for layer in range(cfg["num_lstm_layer"]):
        lw = params["lstm"][layer]
        din = h.shape[-1]
        proj = matmul_bias(h.reshape(S * Bp, din), lw["w_ih_t"], lw["b"],
                           slope=None, tile_n=tile_n, vmem=vmem)   # (S*Bp, 8H)
        h = bilstm_recurrence(proj.reshape(S, Bp, 8 * H), lw["w_hh_t"],
                              hidden=H, vmem=vmem)                 # (S, Bp, 2H)

    # BatchNorm1d (eval): fold running stats + affine into the fused MLP
    # weight/bias (weight-sized work, done once per call).
    eps = 1e-5
    scale = params["bn_gamma"] * lax.rsqrt(params["bn_var"] + eps)      # (2H,)
    shift = params["bn_beta"] - params["bn_mean"] * scale
    w_mlp = (params["w_mlp_t"] * scale[:, None]).astype(jnp.bfloat16)   # (2H, Mtot)
    b_mlp = params["b_mlp"] + shift[None, :] @ params["w_mlp_t"]        # (1, Mtot)

    mlp_out = matmul_bias(h.reshape(S * Bp, 2 * H), w_mlp, b_mlp,
                          slope=0.1, tile_n=tile_n, vmem=vmem)          # (S*Bp, Mtot)

    a, r = cfg["arc_mlp_size"], cfg["rel_mlp_size"]
    m3 = mlp_out.reshape(S, Bp, 2 * a + 2 * r)
    # Per-sentence (S, d) blocks for the biaffine (single fused copy in XLA).
    arc_dep = jnp.transpose(m3[:, :, 0:a], (1, 0, 2))                   # (Bp, S, a)
    arc_head = jnp.transpose(m3[:, :, a:2 * a], (1, 0, 2))
    rel_dep = jnp.transpose(m3[:, :, 2 * a:2 * a + r], (1, 0, 2))       # (Bp, S, r)
    rel_head = jnp.transpose(m3[:, :, 2 * a + r:], (1, 0, 2))

    # arc biaffine: bias=(True, False, False) -> dep-side ones column only.
    arc = biaffine(arc_dep, arc_head,
                   params["w_arc_main"], params["w_arc_hb"],
                   jnp.zeros((1, 1, a), jnp.bfloat16),
                   jnp.zeros((1, 1, 1), jnp.float32),
                   batch=B, vmem=vmem)                                  # (B, 1, S, S)
    arc_logit = arc.reshape(B, S, S, 1)            # free: matches reference layout

    # rel biaffine: bias=(True, True, True).
    # TODO(synk): third bias flag is a no-op in the reference layer.Biaffine.
    rel_logit = biaffine(rel_dep, rel_head,
                         params["w_rel_main"], params["w_rel_hb"],
                         params["w_rel_db"], params["w_rel_c"],
                         batch=B, vmem=vmem)                            # (B, L, S, S)
    # NOTE: returned lane-dense as (B, n_out, S, S); the reference (PyTorch)
    # layout is jnp.transpose(rel_logit, (0, 2, 3, 1)) = (B, len_head, len_dep, n_out).
    return arc_logit, rel_logit


# --------------------------------------------------------------------------
# Deterministic synthetic parameters (stored in kernel layout).
# Importing a real PyTorch checkpoint requires: permute LSTM gates
# (i,f,g,o)->(i,f,o,g), transpose W_ih/W_hh, concat directions, sum b_ih+b_hh,
# concat the four MLP weights along the output dim, and split each Biaffine
# weight W (n_out, d2+1?, d1+1) into main / head-col / dep-row / corner.
# --------------------------------------------------------------------------
def init_params(key, cfg):
    ks = iter(jax.random.split(key, 64))

    def rnd(shape, scale=0.1, dtype=jnp.float32):
        return (scale * jax.random.normal(next(ks), shape)).astype(dtype)

    H = cfg["lstm_hidden"]
    a, r, L = cfg["arc_mlp_size"], cfg["rel_mlp_size"], cfg["label_size"]
    in_dim = cfg["word_dim"] + cfg["pos_dim"]
    bf = jnp.bfloat16

    p = {
        "embed": rnd((cfg["word_num"], cfg["word_dim"])),
        "pre_embed": rnd((cfg["word_num"], cfg["word_dim"])),
        "pos_embed": rnd((cfg["pos_num"], cfg["pos_dim"])),
        "bn_gamma": 1.0 + rnd((2 * H,), 0.05),
        "bn_beta": rnd((2 * H,), 0.05),
        "bn_mean": rnd((2 * H,), 0.05),
        "bn_var": 1.0 + jnp.abs(rnd((2 * H,), 0.05)),
        # Fused MLP weight (2H, M_total), columns [arc_dep|arc_head|rel_dep|rel_head].
        "w_mlp_t": rnd((2 * H, 2 * a + 2 * r)),
        "b_mlp": rnd((1, 2 * a + 2 * r)),
        # Biaffine weights, pre-split (main / head-bias col / dep-bias row / corner).
        "w_arc_main": rnd((1, a, a), dtype=bf),
        "w_arc_hb": rnd((1, a, 1), dtype=bf),
        "w_rel_main": rnd((L, r, r), dtype=bf),
        "w_rel_hb": rnd((L, r, 1), dtype=bf),
        "w_rel_db": rnd((L, 1, r), dtype=bf),
        "w_rel_c": rnd((L, 1, 1)),
    }
    lstm = []
    for layer in range(cfg["num_lstm_layer"]):
        din = in_dim if layer == 0 else 2 * H
        lstm.append({
            # (din, 8H) bf16: columns [fwd (i,f,o,g) | bwd (i,f,o,g)], pre-transposed.
            "w_ih_t": rnd((din, 8 * H), dtype=bf),
            # (2, H, 4H) bf16: per-direction recurrent weights, pre-transposed.
            "w_hh_t": rnd((2, H, 4 * H), dtype=bf),
            # (1, 8H) f32: per-direction b_ih + b_hh (summed).
            "b": rnd((1, 8 * H)),
        })
    p["lstm"] = lstm
    return p


# --------------------------------------------------------------------------
# Pure-JAX f32 reference (same bf16-rounded weights) for a tolerance check.
# --------------------------------------------------------------------------
def _reference_forward(params, word_ids, pos_ids, cfg):
    H = cfg["lstm_hidden"]
    B, S = word_ids.shape
    f32 = lambda x: x.astype(jnp.float32)

    h = jnp.concatenate(
        [params["embed"][word_ids] + params["pre_embed"][word_ids],
         params["pos_embed"][pos_ids]], axis=-1)                      # (B, S, Din)

    for lw in params["lstm"]:
        w_ih = f32(lw["w_ih_t"])
        w_hh = f32(lw["w_hh_t"])
        bias = lw["b"][0]
        outs = []
        for d in range(2):
            wi = w_ih[:, d * 4 * H:(d + 1) * 4 * H]
            bi = bias[d * 4 * H:(d + 1) * 4 * H]
            wh = w_hh[d]

            def cell(carry, x_t, wi=wi, bi=bi, wh=wh):
                hp, cp = carry
                g = x_t @ wi + bi + hp @ wh
                i = jax.nn.sigmoid(g[:, 0:H])
                f = jax.nn.sigmoid(g[:, H:2 * H])
                o = jax.nn.sigmoid(g[:, 2 * H:3 * H])
                gg = jnp.tanh(g[:, 3 * H:])
                c = f * cp + i * gg
                hn = o * jnp.tanh(c)
                return (hn, c), hn

            xs = jnp.transpose(h, (1, 0, 2))
            if d == 1:
                xs = xs[::-1]
            _, ys = lax.scan(cell, (jnp.zeros((B, H)), jnp.zeros((B, H))), xs)
            if d == 1:
                ys = ys[::-1]
            outs.append(ys)
        h = jnp.transpose(jnp.concatenate(outs, axis=-1), (1, 0, 2))  # (B, S, 2H)

    eps = 1e-5
    scale = params["bn_gamma"] / jnp.sqrt(params["bn_var"] + eps)
    shift = params["bn_beta"] - params["bn_mean"] * scale
    hn = h * scale + shift
    mlp = hn.reshape(B * S, -1) @ params["w_mlp_t"] + params["b_mlp"]
    mlp = jnp.where(mlp > 0, mlp, 0.1 * mlp)
    a, r = cfg["arc_mlp_size"], cfg["rel_mlp_size"]
    m = mlp.reshape(B, S, -1)
    arc_dep, arc_head = m[..., :a], m[..., a:2 * a]
    rel_dep, rel_head = m[..., 2 * a:2 * a + r], m[..., 2 * a + r:]

    wm = f32(params["w_arc_main"][0])
    whb = f32(params["w_arc_hb"][0][:, 0])
    arc = (jnp.einsum("bjp,pq,biq->bji", arc_head, wm, arc_dep)
           + jnp.einsum("bjp,p->bj", arc_head, whb)[:, :, None])[..., None]

    wrm = f32(params["w_rel_main"])
    wrhb = f32(params["w_rel_hb"][..., 0])
    wrdb = f32(params["w_rel_db"][:, 0, :])
    wrc = params["w_rel_c"][:, 0, 0]
    rel = (jnp.einsum("bjp,opq,biq->boji", rel_head, wrm, rel_dep)
           + jnp.einsum("bjp,op->boj", rel_head, wrhb)[:, :, :, None]
           + jnp.einsum("biq,oq->boi", rel_dep, wrdb)[:, :, None, :]
           + wrc[None, :, None, None])
    return arc, rel


if __name__ == "__main__":
    cfg = dict(word_num=50, word_dim=16, pos_num=12, pos_dim=8,
               lstm_hidden=32, num_lstm_layer=1,
               arc_mlp_size=32, rel_mlp_size=16, label_size=8)
    B, S = 2, 8

    key = jax.random.PRNGKey(0)
    k_params, k_word, k_pos = jax.random.split(key, 3)
    word_ids = jax.random.randint(k_word, (B, S), 0, cfg["word_num"], dtype=jnp.int32)
    pos_ids = jax.random.randint(k_pos, (B, S), 0, cfg["pos_num"], dtype=jnp.int32)
    params = init_params(k_params, cfg)

    fwd = jax.jit(lambda p, w, t: parser_forward(p, w, t, cfg))
    arc_logit, rel_logit = fwd(params, word_ids, pos_ids)
    jax.block_until_ready((arc_logit, rel_logit))

    assert arc_logit.shape == (B, S, S, 1), arc_logit.shape
    assert rel_logit.shape == (B, cfg["label_size"], S, S), rel_logit.shape
    assert bool(jnp.all(jnp.isfinite(arc_logit)))
    assert bool(jnp.all(jnp.isfinite(rel_logit)))

    # Tolerance check vs. a pure-JAX f32 reference (bf16 MXU inputs only).
    arc_ref, rel_ref = _reference_forward(params, word_ids, pos_ids, cfg)
    err = max(float(jnp.max(jnp.abs(arc_logit - arc_ref))),
              float(jnp.max(jnp.abs(rel_logit - rel_ref))))
    assert err < 5e-2, f"max abs error vs f32 reference: {err}"

    print("KERNEL_OK")
</pallas_src>

<mosaic_0001>
module attributes {stable_mosaic.version = 11 : i64} {
  func.func @_matmul_bias_kernel(%arg0: i32, %arg1: memref<64x24xf32, #tpu.memory_space<vmem>>, %arg2: memref<24x256xbf16, #tpu.memory_space<vmem>>, %arg3: memref<1x256xf32, #tpu.memory_space<vmem>>, %arg4: memref<64x256xf32, #tpu.memory_space<vmem>>) attributes {dimension_semantics = [#tpu.dimension_semantics<parallel>], iteration_bounds = array<i64: 1>, scalar_prefetch = 0 : i64, scratch_operands = 0 : i64, tpu.core_type = #tpu.core_type<tc>, window_params = [{transform_indices = @transform_0, window_bounds = array<i64: 64, 24>}, {pipeline_mode = #tpu.pipeline_mode<synchronous>, transform_indices = @transform_1, window_bounds = array<i64: 24, 256>}, {pipeline_mode = #tpu.pipeline_mode<synchronous>, transform_indices = @transform_2, window_bounds = array<i64: 1, 256>}, {transform_indices = @transform_3, window_bounds = array<i64: 64, 256>}]} {
    %c0 = arith.constant 0 : index
    %c0_0 = arith.constant 0 : index
    %0 = vector.load %arg1[%c0, %c0_0] : memref<64x24xf32, #tpu.memory_space<vmem>>, vector<64x24xf32>
    %1 = arith.truncf %0 : vector<64x24xf32> to vector<64x24xbf16>
    %c0_1 = arith.constant 0 : index
    %c0_2 = arith.constant 0 : index
    %2 = vector.load %arg2[%c0_1, %c0_2] : memref<24x256xbf16, #tpu.memory_space<vmem>>, vector<24x256xbf16>
    %cst = arith.constant dense<0.000000e+00> : vector<64x256xf32>
    %3 = tpu.matmul %1, %2, %cst {dimension_numbers = #tpu.dot_dimension_numbers<[1], [0], [0], [1], [0, 0, 1, 1], [], []>} : vector<64x24xbf16>, vector<24x256xbf16>, vector<64x256xf32> -> vector<64x256xf32>
    %c0_3 = arith.constant 0 : index
    %c0_4 = arith.constant 0 : index
    %4 = vector.load %arg3[%c0_3, %c0_4] : memref<1x256xf32, #tpu.memory_space<vmem>>, vector<1x256xf32>
    %5 = vector.broadcast %4 : vector<1x256xf32> to vector<64x256xf32>
    %6 = arith.addf %3, %5 : vector<64x256xf32>
    %c0_5 = arith.constant 0 : index
    %c0_6 = arith.constant 0 : index
    %7 = vector.load %arg4[%c0_5, %c0_6] : memref<64x256xf32, #tpu.memory_space<vmem>>, vector<64x256xf32>
    tpu.vector_store %arg4[%c0_5, %c0_6], %6 {strides = array<i32>} : memref<64x256xf32, #tpu.memory_space<vmem>>, vector<64x256xf32>,
    return
  }
  func.func @transform_0(%arg0: i32) -> (i32, i32) {
    %c0_i32 = arith.constant 0 : i32
    %c0_i32_0 = arith.constant 0 : i32
    return %arg0, %c0_i32 : i32, i32
  }
  func.func @transform_1(%arg0: i32) -> (i32, i32) {
    %c0_i32 = arith.constant 0 : i32
    %c0_i32_0 = arith.constant 0 : i32
    %c0_i32_1 = arith.constant 0 : i32
    return %c0_i32, %c0_i32_0 : i32, i32
  }
  func.func @transform_2(%arg0: i32) -> (i32, i32) {
    %c0_i32 = arith.constant 0 : i32
    %c0_i32_0 = arith.constant 0 : i32
    %c0_i32_1 = arith.constant 0 : i32
    return %c0_i32, %c0_i32_0 : i32, i32
  }
  func.func @transform_3(%arg0: i32) -> (i32, i32) {
    %c0_i32 = arith.constant 0 : i32
    %c0_i32_0 = arith.constant 0 : i32
    return %arg0, %c0_i32 : i32, i32
  }
}

module attributes {stable_mosaic.version = 11 : i64} {
  func.func @_matmul_bias_kernel(%arg0: i32, %arg1: memref<64x64xf32, #tpu.memory_space<vmem>>, %arg2: memref<64x96xbf16, #tpu.memory_space<vmem>>, %arg3: memref<1x96xf32, #tpu.memory_space<vmem>>, %arg4: memref<64x96xf32, #tpu.memory_space<vmem>>) attributes {dimension_semantics = [#tpu.dimension_semantics<parallel>], iteration_bounds = array<i64: 1>, scalar_prefetch = 0 : i64, scratch_operands = 0 : i64, tpu.core_type = #tpu.core_type<tc>, window_params = [{transform_indices = @transform_0, window_bounds = array<i64: 64, 64>}, {pipeline_mode = #tpu.pipeline_mode<synchronous>, transform_indices = @transform_1, window_bounds = array<i64: 64, 96>}, {pipeline_mode = #tpu.pipeline_mode<synchronous>, transform_indices = @transform_2, window_bounds = array<i64: 1, 96>}, {transform_indices = @transform_3, window_bounds = array<i64: 64, 96>}]} {
    %c0 = arith.constant 0 : index
    %c0_0 = arith.constant 0 : index
    %0 = vector.load %arg1[%c0, %c0_0] : memref<64x64xf32, #tpu.memory_space<vmem>>, vector<64x64xf32>
    %1 = arith.truncf %0 : vector<64x64xf32> to vector<64x64xbf16>
    %c0_1 = arith.constant 0 : index
    %c0_2 = arith.constant 0 : index
    %2 = vector.load %arg2[%c0_1, %c0_2] : memref<64x96xbf16, #tpu.memory_space<vmem>>, vector<64x96xbf16>
    %cst = arith.constant dense<0.000000e+00> : vector<64x96xf32>
    %3 = tpu.matmul %1, %2, %cst {dimension_numbers = #tpu.dot_dimension_numbers<[1], [0], [0], [1], [0, 0, 1, 1], [], []>} : vector<64x64xbf16>, vector<64x96xbf16>, vector<64x96xf32> -> vector<64x96xf32>
    %c0_3 = arith.constant 0 : index
    %c0_4 = arith.constant 0 : index
    %4 = vector.load %arg3[%c0_3, %c0_4] : memref<1x96xf32, #tpu.memory_space<vmem>>, vector<1x96xf32>
    %5 = vector.broadcast %4 : vector<1x96xf32> to vector<64x96xf32>
    %6 = arith.addf %3, %5 : vector<64x96xf32>
    %cst_5 = arith.constant 0.000000e+00 : f32
    %7 = vector.broadcast %cst_5 : f32 to vector<64x96xf32>
    %8 = arith.cmpf ogt, %6, %7 : vector<64x96xf32>
    %cst_6 = arith.constant 1.000000e-01 : f32
    %9 = vector.broadcast %cst_6 : f32 to vector<64x96xf32>
    %10 = arith.mulf %9, %6 : vector<64x96xf32>
    %11 = arith.select %8, %6, %10 : vector<64x96xi1>, vector<64x96xf32>
    %c0_7 = arith.constant 0 : index
    %c0_8 = arith.constant 0 : index
    %12 = vector.load %arg4[%c0_7, %c0_8] : memref<64x96xf32, #tpu.memory_space<vmem>>, vector<64x96xf32>
    tpu.vector_store %arg4[%c0_7, %c0_8], %11 {strides = array<i32>} : memref<64x96xf32, #tpu.memory_space<vmem>>, vector<64x96xf32>,
    return
  }
  func.func @transform_0(%arg0: i32) -> (i32, i32) {
    %c0_i32 = arith.constant 0 : i32
    %c0_i32_0 = arith.constant 0 : i32
    return %arg0, %c0_i32 : i32, i32
  }
  func.func @transform_1(%arg0: i32) -> (i32, i32) {
    %c0_i32 = arith.constant 0 : i32
    %c0_i32_0 = arith.constant 0 : i32
    %c0_i32_1 = arith.constant 0 : i32
    return %c0_i32, %c0_i32_0 : i32, i32
  }
  func.func @transform_2(%arg0: i32) -> (i32, i32) {
    %c0_i32 = arith.constant 0 : i32
    %c0_i32_0 = arith.constant 0 : i32
    %c0_i32_1 = arith.constant 0 : i32
    return %c0_i32, %c0_i32_0 : i32, i32
  }
  func.func @transform_3(%arg0: i32) -> (i32, i32) {
    %c0_i32 = arith.constant 0 : i32
    %c0_i32_0 = arith.constant 0 : i32
    return %arg0, %c0_i32 : i32, i32
  }
}

module attributes {stable_mosaic.version = 11 : i64} {
  func.func @_bilstm_rec_kernel(%arg0: memref<8x8x256xf32, #tpu.memory_space<vmem>>, %arg1: memref<2x32x128xbf16, #tpu.memory_space<vmem>>, %arg2: memref<8x8x64xf32, #tpu.memory_space<vmem>>, %arg3: memref<2x8x32xf32, #tpu.memory_space<vmem>>, %arg4: memref<2x8x32xf32, #tpu.memory_space<vmem>>) attributes {dimension_semantics = [], scalar_prefetch = 0 : i64, scratch_operands = 2 : i64, tpu.core_type = #tpu.core_type<tc>} {
    %cst = arith.constant 0.000000e+00 : f32
    %0 = vector.broadcast %cst : f32 to vector<2x8x32xf32>
    %c0 = arith.constant 0 : index
    %c0_0 = arith.constant 0 : index
    %c0_1 = arith.constant 0 : index
    %1 = vector.load %arg3[%c0, %c0_0, %c0_1] : memref<2x8x32xf32, #tpu.memory_space<vmem>>, vector<2x8x32xf32>
    tpu.vector_store %arg3[%c0, %c0_0, %c0_1], %0 {strides = array<i32>} : memref<2x8x32xf32, #tpu.memory_space<vmem>>, vector<2x8x32xf32>,
    %cst_2 = arith.constant 0.000000e+00 : f32
    %2 = vector.broadcast %cst_2 : f32 to vector<2x8x32xf32>
    %c0_3 = arith.constant 0 : index
    %c0_4 = arith.constant 0 : index
    %c0_5 = arith.constant 0 : index
    %3 = vector.load %arg4[%c0_3, %c0_4, %c0_5] : memref<2x8x32xf32, #tpu.memory_space<vmem>>, vector<2x8x32xf32>
    tpu.vector_store %arg4[%c0_3, %c0_4, %c0_5], %2 {strides = array<i32>} : memref<2x8x32xf32, #tpu.memory_space<vmem>>, vector<2x8x32xf32>,
    %c0_i32 = arith.constant 0 : i32
    %c8_i32 = arith.constant 8 : i32
    %4 = arith.addi %c0_i32, %c8_i32 : i32
    %c1_i32 = arith.constant 1 : i32
    scf.for %arg5 = %c0_i32 to %4 step %c1_i32  : i32 {
      %c7_i32 = arith.constant 7 : i32
      %5 = arith.subi %c7_i32, %arg5 : i32
      %6 = arith.index_cast %arg5 : i32 to index
      %c0_7 = arith.constant 0 : index
      %c0_8 = arith.constant 0 : index
      %7 = vector.load %arg0[%6, %c0_7, %c0_8] : memref<8x8x256xf32, #tpu.memory_space<vmem>>, vector<1x8x256xf32>
      %8 = vector.shape_cast %7 : vector<1x8x256xf32> to vector<8x256xf32>
      %9 = arith.index_cast %5 : i32 to index
      %c0_9 = arith.constant 0 : index
      %c0_10 = arith.constant 0 : index
      %10 = vector.load %arg0[%9, %c0_9, %c0_10] : memref<8x8x256xf32, #tpu.memory_space<vmem>>, vector<1x8x256xf32>
      %11 = vector.shape_cast %10 : vector<1x8x256xf32> to vector<8x256xf32>
      %12 = vector.extract_strided_slice %8 {offsets = [0, 0], sizes = [8, 128], strides = [1, 1]} : vector<8x256xf32> to vector<8x128xf32>
      %13 = vector.extract_strided_slice %11 {offsets = [0, 128], sizes = [8, 128], strides = [1, 1]} : vector<8x256xf32> to vector<8x128xf32>
      %14 = vector.shape_cast %12 : vector<8x128xf32> to vector<1x8x128xf32>
      %15 = vector.shape_cast %13 : vector<8x128xf32> to vector<1x8x128xf32>
      %16 = tpu.concatenate %14, %15 in 0 : vector<1x8x128xf32>, vector<1x8x128xf32> -> vector<2x8x128xf32>
      %c0_11 = arith.constant 0 : index
      %c0_12 = arith.constant 0 : index
      %c0_13 = arith.constant 0 : index
      %17 = vector.load %arg3[%c0_11, %c0_12, %c0_13] : memref<2x8x32xf32, #tpu.memory_space<vmem>>, vector<2x8x32xf32>
      %18 = arith.truncf %17 : vector<2x8x32xf32> to vector<2x8x32xbf16>
      %c0_14 = arith.constant 0 : index
      %c0_15 = arith.constant 0 : index
      %c0_16 = arith.constant 0 : index
      %19 = vector.load %arg1[%c0_14, %c0_15, %c0_16] : memref<2x32x128xbf16, #tpu.memory_space<vmem>>, vector<2x32x128xbf16>
      %cst_17 = arith.constant dense<0.000000e+00> : vector<2x8x128xf32>
      %20 = tpu.matmul %18, %19, %cst_17 {dimension_numbers = #tpu.dot_dimension_numbers<[2], [1], [1], [2], [0, 0, 0, 1, 1, 2], [0], [0]>} : vector<2x8x32xbf16>, vector<2x32x128xbf16>, vector<2x8x128xf32> -> vector<2x8x128xf32>
      %21 = arith.addf %16, %20 : vector<2x8x128xf32>
      %22 = arith.negf %21 : vector<2x8x128xf32>
      %23 = math.exp %22 : vector<2x8x128xf32>
      %cst_18 = arith.constant 1.000000e+00 : f32
      %24 = vector.broadcast %cst_18 : f32 to vector<2x8x128xf32>
      %25 = arith.addf %24, %23 : vector<2x8x128xf32>
      %26 = arith.divf %24, %25 : vector<2x8x128xf32>
      %27 = math.tanh %21 : vector<2x8x128xf32>
      %28 = vector.extract_strided_slice %26 {offsets = [0, 0, 0], sizes = [2, 8, 32], strides = [1, 1, 1]} : vector<2x8x128xf32> to vector<2x8x32xf32>
      %29 = vector.extract_strided_slice %26 {offsets = [0, 0, 32], sizes = [2, 8, 32], strides = [1, 1, 1]} : vector<2x8x128xf32> to vector<2x8x32xf32>
      %30 = vector.extract_strided_slice %26 {offsets = [0, 0, 64], sizes = [2, 8, 32], strides = [1, 1, 1]} : vector<2x8x128xf32> to vector<2x8x32xf32>
      %31 = vector.extract_strided_slice %27 {offsets = [0, 0, 96], sizes = [2, 8, 32], strides = [1, 1, 1]} : vector<2x8x128xf32> to vector<2x8x32xf32>
      %c0_19 = arith.constant 0 : index
      %c0_20 = arith.constant 0 : index
      %c0_21 = arith.constant 0 : index
      %32 = vector.load %arg4[%c0_19, %c0_20, %c0_21] : memref<2x8x32xf32, #tpu.memory_space<vmem>>, vector<2x8x32xf32>
      %33 = arith.mulf %29, %32 : vector<2x8x32xf32>
      %34 = arith.mulf %28, %31 : vector<2x8x32xf32>
      %35 = arith.addf %33, %34 : vector<2x8x32xf32>
      %36 = math.tanh %35 : vector<2x8x32xf32>
      %37 = arith.mulf %30, %36 : vector<2x8x32xf32>
      %c0_22 = arith.constant 0 : index
      %c0_23 = arith.constant 0 : index
      %c0_24 = arith.constant 0 : index
      %38 = vector.load %arg4[%c0_22, %c0_23, %c0_24] : memref<2x8x32xf32, #tpu.memory_space<vmem>>, vector<2x8x32xf32>
      tpu.vector_store %arg4[%c0_22, %c0_23, %c0_24], %35 {strides = array<i32>} : memref<2x8x32xf32, #tpu.memory_space<vmem>>, vector<2x8x32xf32>,
      %c0_25 = arith.constant 0 : index
      %c0_26 = arith.constant 0 : index
      %c0_27 = arith.constant 0 : index
      %39 = vector.load %arg3[%c0_25, %c0_26, %c0_27] : memref<2x8x32xf32, #tpu.memory_space<vmem>>, vector<2x8x32xf32>
      tpu.vector_store %arg3[%c0_25, %c0_26, %c0_27], %37 {strides = array<i32>} : memref<2x8x32xf32, #tpu.memory_space<vmem>>, vector<2x8x32xf32>,
      %40 = vector.extract_strided_slice %37 {offsets = [0, 0, 0], sizes = [1, 8, 32], strides = [1, 1, 1]} : vector<2x8x32xf32> to vector<1x8x32xf32>
      %41 = vector.shape_cast %40 : vector<1x8x32xf32> to vector<8x32xf32>
      %42 = arith.index_cast %arg5 : i32 to index
      %c0_28 = arith.constant 0 : index
      %c0_29 = arith.constant 0 : index
      %43 = vector.load %arg2[%42, %c0_28, %c0_29] : memref<8x8x64xf32, #tpu.memory_space<vmem>>, vector<1x8x32xf32>
      %44 = vector.shape_cast %43 : vector<1x8x32xf32> to vector<8x32xf32>
      %45 = vector.shape_cast %41 : vector<8x32xf32> to vector<1x8x32xf32>
      tpu.vector_store %arg2[%42, %c0_28, %c0_29], %45 {strides = array<i32>} : memref<8x8x64xf32, #tpu.memory_space<vmem>>, vector<1x8x32xf32>,
      %46 = vector.extract_strided_slice %37 {offsets = [1, 0, 0], sizes = [1, 8, 32], strides = [1, 1, 1]} : vector<2x8x32xf32> to vector<1x8x32xf32>
      %47 = vector.shape_cast %46 : vector<1x8x32xf32> to vector<8x32xf32>
      %48 = arith.index_cast %5 : i32 to index
      %c0_30 = arith.constant 0 : index
      %c32 = arith.constant 32 : index
      %49 = vector.load %arg2[%48, %c0_30, %c32] : memref<8x8x64xf32, #tpu.memory_space<vmem>>, vector<1x8x32xf32>
      %50 = vector.shape_cast %49 : vector<1x8x32xf32> to vector<8x32xf32>
      %51 = vector.shape_cast %47 : vector<8x32xf32> to vector<1x8x32xf32>
      tpu.vector_store %arg2[%48, %c0_30, %c32], %51 {strides = array<i32>} : memref<8x8x64xf32, #tpu.memory_space<vmem>>, vector<1x8x32xf32>,
    }
    %c8_i32_6 = arith.constant 8 : i32
    return
  }
}

module attributes {stable_mosaic.version = 11 : i64} {
  func.func @_biaffine_kernel(%arg0: i32, %arg1: i32, %arg2: memref<1x8x32xf32, #tpu.memory_space<vmem>>, %arg3: memref<1x8x32xf32, #tpu.memory_space<vmem>>, %arg4: memref<1x32x32xbf16, #tpu.memory_space<vmem>>, %arg5: memref<1x32x1xbf16, #tpu.memory_space<vmem>>, %arg6: memref<1x1x32xbf16, #tpu.memory_space<vmem>>, %arg7: memref<1x1x1xf32, #tpu.memory_space<vmem>>, %arg8: memref<1x1x8x8xf32, #tpu.memory_space<vmem>>) attributes {dimension_semantics = [#tpu.dimension_semantics<parallel>, #tpu.dimension_semantics<parallel>], iteration_bounds = array<i64: 2, 1>, scalar_prefetch = 0 : i64, scratch_operands = 0 : i64, tpu.core_type = #tpu.core_type<tc>, window_params = [{transform_indices = @transform_0, window_bounds = array<i64: 1, 8, 32>}, {transform_indices = @transform_1, window_bounds = array<i64: 1, 8, 32>}, {transform_indices = @transform_2, window_bounds = array<i64: 1, 32, 32>}, {transform_indices = @transform_3, window_bounds = array<i64: 1, 32, 1>}, {transform_indices = @transform_4, window_bounds = array<i64: 1, 1, 32>}, {transform_indices = @transform_5, window_bounds = array<i64: 1, 1, 1>}, {transform_indices = @transform_6, window_bounds = array<i64: 1, 1, 8, 8>}]} {
    %c0 = arith.constant 0 : index
    %c0_0 = arith.constant 0 : index
    %c0_1 = arith.constant 0 : index
    %0 = vector.load %arg2[%c0, %c0_0, %c0_1] : memref<1x8x32xf32, #tpu.memory_space<vmem>>, vector<1x8x32xf32>
    %1 = vector.shape_cast %0 : vector<1x8x32xf32> to vector<8x32xf32>
    %2 = arith.truncf %1 : vector<8x32xf32> to vector<8x32xbf16>
    %c0_2 = arith.constant 0 : index
    %c0_3 = arith.constant 0 : index
    %c0_4 = arith.constant 0 : index
    %3 = vector.load %arg3[%c0_2, %c0_3, %c0_4] : memref<1x8x32xf32, #tpu.memory_space<vmem>>, vector<1x8x32xf32>
    %4 = vector.shape_cast %3 : vector<1x8x32xf32> to vector<8x32xf32>
    %5 = arith.truncf %4 : vector<8x32xf32> to vector<8x32xbf16>
    %c0_5 = arith.constant 0 : index
    %c0_6 = arith.constant 0 : index
    %c0_7 = arith.constant 0 : index
    %6 = vector.load %arg4[%c0_5, %c0_6, %c0_7] : memref<1x32x32xbf16, #tpu.memory_space<vmem>>, vector<1x32x32xbf16>
    %7 = vector.shape_cast %6 : vector<1x32x32xbf16> to vector<32x32xbf16>
    %cst = arith.constant dense<0.000000e+00> : vector<8x32xf32>
    %8 = tpu.matmul %5, %7, %cst {dimension_numbers = #tpu.dot_dimension_numbers<[1], [0], [0], [1], [0, 0, 1, 1], [], []>} : vector<8x32xbf16>, vector<32x32xbf16>, vector<8x32xf32> -> vector<8x32xf32>
    %9 = arith.truncf %8 : vector<8x32xf32> to vector<8x32xbf16>
    %cst_8 = arith.constant dense<0.000000e+00> : vector<8x8xf32>
    %10 = tpu.matmul %9, %2, %cst_8 {dimension_numbers = #tpu.dot_dimension_numbers<[1], [1], [0], [0], [0, 0, 1, 0], [], []>} : vector<8x32xbf16>, vector<8x32xbf16>, vector<8x8xf32> -> vector<8x8xf32>
    %c0_9 = arith.constant 0 : index
    %c0_10 = arith.constant 0 : index
    %c0_11 = arith.constant 0 : index
    %11 = vector.load %arg5[%c0_9, %c0_10, %c0_11] : memref<1x32x1xbf16, #tpu.memory_space<vmem>>, vector<1x32x1xbf16>
    %12 = vector.shape_cast %11 : vector<1x32x1xbf16> to vector<32x1xbf16>
    %cst_12 = arith.constant dense<0.000000e+00> : vector<8x1xf32>
    %13 = tpu.matmul %5, %12, %cst_12 {dimension_numbers = #tpu.dot_dimension_numbers<[1], [0], [0], [1], [0, 0, 1, 1], [], []>} : vector<8x32xbf16>, vector<32x1xbf16>, vector<8x1xf32> -> vector<8x1xf32>
    %c0_13 = arith.constant 0 : index
    %c0_14 = arith.constant 0 : index
    %c0_15 = arith.constant 0 : index
    %14 = vector.load %arg6[%c0_13, %c0_14, %c0_15] : memref<1x1x32xbf16, #tpu.memory_space<vmem>>, vector<1x1x32xbf16>
    %15 = vector.shape_cast %14 : vector<1x1x32xbf16> to vector<1x32xbf16>
    %cst_16 = arith.constant dense<0.000000e+00> : vector<1x8xf32>
    %16 = tpu.matmul %15, %2, %cst_16 {dimension_numbers = #tpu.dot_dimension_numbers<[1], [1], [0], [0], [0, 0, 1, 0], [], []>} : vector<1x32xbf16>, vector<8x32xbf16>, vector<1x8xf32> -> vector<1x8xf32>
    %17 = vector.broadcast %13 : vector<8x1xf32> to vector<8x8xf32>
    %18 = arith.addf %10, %17 : vector<8x8xf32>
    %19 = vector.broadcast %16 : vector<1x8xf32> to vector<8x8xf32>
    %20 = arith.addf %18, %19 : vector<8x8xf32>
    %c0_17 = arith.constant 0 : index
    %c0_18 = arith.constant 0 : index
    %c0_19 = arith.constant 0 : index
    %21 = vector.load %arg7[%c0_17, %c0_18, %c0_19] : memref<1x1x1xf32, #tpu.memory_space<vmem>>, vector<1x1x1xf32>
    %22 = vector.shape_cast %21 : vector<1x1x1xf32> to vector<1x1xf32>
    %23 = vector.broadcast %22 : vector<1x1xf32> to vector<8x8xf32>
    %24 = arith.addf %20, %23 : vector<8x8xf32>
    %c0_20 = arith.constant 0 : index
    %c0_21 = arith.constant 0 : index
    %c0_22 = arith.constant 0 : index
    %c0_23 = arith.constant 0 : index
    %25 = vector.load %arg8[%c0_20, %c0_21, %c0_22, %c0_23] : memref<1x1x8x8xf32, #tpu.memory_space<vmem>>, vector<1x1x8x8xf32>
    %26 = vector.shape_cast %25 : vector<1x1x8x8xf32> to vector<8x8xf32>
    %27 = vector.shape_cast %24 : vector<8x8xf32> to vector<1x1x8x8xf32>
    tpu.vector_store %arg8[%c0_20, %c0_21, %c0_22, %c0_23], %27 {strides = array<i32>} : memref<1x1x8x8xf32, #tpu.memory_space<vmem>>, vector<1x1x8x8xf32>,
    return
  }
  func.func @transform_0(%arg0: i32, %arg1: i32) -> (i32, i32, i32) {
    %c0_i32 = arith.constant 0 : i32
    %c0_i32_0 = arith.constant 0 : i32
    %c0_i32_1 = arith.constant 0 : i32
    return %arg0, %c0_i32, %c0_i32_0 : i32, i32, i32
  }
  func.func @transform_1(%arg0: i32, %arg1: i32) -> (i32, i32, i32) {
    %c0_i32 = arith.constant 0 : i32
    %c0_i32_0 = arith.constant 0 : i32
    %c0_i32_1 = arith.constant 0 : i32
    return %arg0, %c0_i32, %c0_i32_0 : i32, i32, i32
  }
  func.func @transform_2(%arg0: i32, %arg1: i32) -> (i32, i32, i32) {
    %c0_i32 = arith.constant 0 : i32
    %c0_i32_0 = arith.constant 0 : i32
    %c0_i32_1 = arith.constant 0 : i32
    return %arg1, %c0_i32, %c0_i32_0 : i32, i32, i32
  }
  func.func @transform_3(%arg0: i32, %arg1: i32) -> (i32, i32, i32) {
    %c0_i32 = arith.constant 0 : i32
    %c0_i32_0 = arith.constant 0 : i32
    %c0_i32_1 = arith.constant 0 : i32
    return %arg1, %c0_i32, %c0_i32_0 : i32, i32, i32
  }
  func.func @transform_4(%arg0: i32, %arg1: i32) -> (i32, i32, i32) {
    %c0_i32 = arith.constant 0 : i32
    %c0_i32_0 = arith.constant 0 : i32
    %c0_i32_1 = arith.constant 0 : i32
    return %arg1, %c0_i32, %c0_i32_0 : i32, i32, i32
  }
  func.func @transform_5(%arg0: i32, %arg1: i32) -> (i32, i32, i32) {
    %c0_i32 = arith.constant 0 : i32
    %c0_i32_0 = arith.constant 0 : i32
    %c0_i32_1 = arith.constant 0 : i32
    return %arg1, %c0_i32, %c0_i32_0 : i32, i32, i32
  }
  func.func @transform_6(%arg0: i32, %arg1: i32) -> (i32, i32, i32, i32) {
    %c0_i32 = arith.constant 0 : i32
    %c0_i32_0 = arith.constant 0 : i32
    %c0_i32_1 = arith.constant 0 : i32
    return %arg0, %arg1, %c0_i32, %c0_i32_0 : i32, i32, i32, i32
  }
}

module attributes {stable_mosaic.version = 11 : i64} {
  func.func @_biaffine_kernel(%arg0: i32, %arg1: i32, %arg2: memref<1x8x16xf32, #tpu.memory_space<vmem>>, %arg3: memref<1x8x16xf32, #tpu.memory_space<vmem>>, %arg4: memref<1x16x16xbf16, #tpu.memory_space<vmem>>, %arg5: memref<1x16x1xbf16, #tpu.memory_space<vmem>>, %arg6: memref<1x1x16xbf16, #tpu.memory_space<vmem>>, %arg7: memref<1x1x1xf32, #tpu.memory_space<vmem>>, %arg8: memref<1x1x8x8xf32, #tpu.memory_space<vmem>>) attributes {dimension_semantics = [#tpu.dimension_semantics<parallel>, #tpu.dimension_semantics<parallel>], iteration_bounds = array<i64: 2, 8>, scalar_prefetch = 0 : i64, scratch_operands = 0 : i64, tpu.core_type = #tpu.core_type<tc>, window_params = [{transform_indices = @transform_0, window_bounds = array<i64: 1, 8, 16>}, {transform_indices = @transform_1, window_bounds = array<i64: 1, 8, 16>}, {transform_indices = @transform_2, window_bounds = array<i64: 1, 16, 16>}, {transform_indices = @transform_3, window_bounds = array<i64: 1, 16, 1>}, {transform_indices = @transform_4, window_bounds = array<i64: 1, 1, 16>}, {transform_indices = @transform_5, window_bounds = array<i64: 1, 1, 1>}, {transform_indices = @transform_6, window_bounds = array<i64: 1, 1, 8, 8>}]} {
    %c0 = arith.constant 0 : index
    %c0_0 = arith.constant 0 : index
    %c0_1 = arith.constant 0 : index
    %0 = vector.load %arg2[%c0, %c0_0, %c0_1] : memref<1x8x16xf32, #tpu.memory_space<vmem>>, vector<1x8x16xf32>
    %1 = vector.shape_cast %0 : vector<1x8x16xf32> to vector<8x16xf32>
    %2 = arith.truncf %1 : vector<8x16xf32> to vector<8x16xbf16>
    %c0_2 = arith.constant 0 : index
    %c0_3 = arith.constant 0 : index
    %c0_4 = arith.constant 0 : index
    %3 = vector.load %arg3[%c0_2, %c0_3, %c0_4] : memref<1x8x16xf32, #tpu.memory_space<vmem>>, vector<1x8x16xf32>
    %4 = vector.shape_cast %3 : vector<1x8x16xf32> to vector<8x16xf32>
    %5 = arith.truncf %4 : vector<8x16xf32> to vector<8x16xbf16>
    %c0_5 = arith.constant 0 : index
    %c0_6 = arith.constant 0 : index
    %c0_7 = arith.constant 0 : index
    %6 = vector.load %arg4[%c0_5, %c0_6, %c0_7] : memref<1x16x16xbf16, #tpu.memory_space<vmem>>, vector<1x16x16xbf16>
    %7 = vector.shape_cast %6 : vector<1x16x16xbf16> to vector<16x16xbf16>
    %cst = arith.constant dense<0.000000e+00> : vector<8x16xf32>
    %8 = tpu.matmul %5, %7, %cst {dimension_numbers = #tpu.dot_dimension_numbers<[1], [0], [0], [1], [0, 0, 1, 1], [], []>} : vector<8x16xbf16>, vector<16x16xbf16>, vector<8x16xf32> -> vector<8x16xf32>
    %9 = arith.truncf %8 : vector<8x16xf32> to vector<8x16xbf16>
    %cst_8 = arith.constant dense<0.000000e+00> : vector<8x8xf32>
    %10 = tpu.matmul %9, %2, %cst_8 {dimension_numbers = #tpu.dot_dimension_numbers<[1], [1], [0], [0], [0, 0, 1, 0], [], []>} : vector<8x16xbf16>, vector<8x16xbf16>, vector<8x8xf32> -> vector<8x8xf32>
    %c0_9 = arith.constant 0 : index
    %c0_10 = arith.constant 0 : index
    %c0_11 = arith.constant 0 : index
    %11 = vector.load %arg5[%c0_9, %c0_10, %c0_11] : memref<1x16x1xbf16, #tpu.memory_space<vmem>>, vector<1x16x1xbf16>
    %12 = vector.shape_cast %11 : vector<1x16x1xbf16> to vector<16x1xbf16>
    %cst_12 = arith.constant dense<0.000000e+00> : vector<8x1xf32>
    %13 = tpu.matmul %5, %12, %cst_12 {dimension_numbers = #tpu.dot_dimension_numbers<[1], [0], [0], [1], [0, 0, 1, 1], [], []>} : vector<8x16xbf16>, vector<16x1xbf16>, vector<8x1xf32> -> vector<8x1xf32>
    %c0_13 = arith.constant 0 : index
    %c0_14 = arith.constant 0 : index
    %c0_15 = arith.constant 0 : index
    %14 = vector.load %arg6[%c0_13, %c0_14, %c0_15] : memref<1x1x16xbf16, #tpu.memory_space<vmem>>, vector<1x1x16xbf16>
    %15 = vector.shape_cast %14 : vector<1x1x16xbf16> to vector<1x16xbf16>
    %cst_16 = arith.constant dense<0.000000e+00> : vector<1x8xf32>
    %16 = tpu.matmul %15, %2, %cst_16 {dimension_numbers = #tpu.dot_dimension_numbers<[1], [1], [0], [0], [0, 0, 1, 0], [], []>} : vector<1x16xbf16>, vector<8x16xbf16>, vector<1x8xf32> -> vector<1x8xf32>
    %17 = vector.broadcast %13 : vector<8x1xf32> to vector<8x8xf32>
    %18 = arith.addf %10, %17 : vector<8x8xf32>
    %19 = vector.broadcast %16 : vector<1x8xf32> to vector<8x8xf32>
    %20 = arith.addf %18, %19 : vector<8x8xf32>
    %c0_17 = arith.constant 0 : index
    %c0_18 = arith.constant 0 : index
    %c0_19 = arith.constant 0 : index
    %21 = vector.load %arg7[%c0_17, %c0_18, %c0_19] : memref<1x1x1xf32, #tpu.memory_space<vmem>>, vector<1x1x1xf32>
    %22 = vector.shape_cast %21 : vector<1x1x1xf32> to vector<1x1xf32>
    %23 = vector.broadcast %22 : vector<1x1xf32> to vector<8x8xf32>
    %24 = arith.addf %20, %23 : vector<8x8xf32>
    %c0_20 = arith.constant 0 : index
    %c0_21 = arith.constant 0 : index
    %c0_22 = arith.constant 0 : index
    %c0_23 = arith.constant 0 : index
    %25 = vector.load %arg8[%c0_20, %c0_21, %c0_22, %c0_23] : memref<1x1x8x8xf32, #tpu.memory_space<vmem>>, vector<1x1x8x8xf32>
    %26 = vector.shape_cast %25 : vector<1x1x8x8xf32> to vector<8x8xf32>
    %27 = vector.shape_cast %24 : vector<8x8xf32> to vector<1x1x8x8xf32>
    tpu.vector_store %arg8[%c0_20, %c0_21, %c0_22, %c0_23], %27 {strides = array<i32>} : memref<1x1x8x8xf32, #tpu.memory_space<vmem>>, vector<1x1x8x8xf32>,
    return
  }
  func.func @transform_0(%arg0: i32, %arg1: i32) -> (i32, i32, i32) {
    %c0_i32 = arith.constant 0 : i32
    %c0_i32_0 = arith.constant 0 : i32
    %c0_i32_1 = arith.constant 0 : i32
    return %arg0, %c0_i32, %c0_i32_0 : i32, i32, i32
  }
  func.func @transform_1(%arg0: i32, %arg1: i32) -> (i32, i32, i32) {
    %c0_i32 = arith.constant 0 : i32
    %c0_i32_0 = arith.constant 0 : i32
    %c0_i32_1 = arith.constant 0 : i32
    return %arg0, %c0_i32, %c0_i32_0 : i32, i32, i32
  }
  func.func @transform_2(%arg0: i32, %arg1: i32) -> (i32, i32, i32) {
    %c0_i32 = arith.constant 0 : i32
    %c0_i32_0 = arith.constant 0 : i32
    %c0_i32_1 = arith.constant 0 : i32
    return %arg1, %c0_i32, %c0_i32_0 : i32, i32, i32
  }
  func.func @transform_3(%arg0: i32, %arg1: i32) -> (i32, i32, i32) {
    %c0_i32 = arith.constant 0 : i32
    %c0_i32_0 = arith.constant 0 : i32
    %c0_i32_1 = arith.constant 0 : i32
    return %arg1, %c0_i32, %c0_i32_0 : i32, i32, i32
  }
  func.func @transform_4(%arg0: i32, %arg1: i32) -> (i32, i32, i32) {
    %c0_i32 = arith.constant 0 : i32
    %c0_i32_0 = arith.constant 0 : i32
    %c0_i32_1 = arith.constant 0 : i32
    return %arg1, %c0_i32, %c0_i32_0 : i32, i32, i32
  }
  func.func @transform_5(%arg0: i32, %arg1: i32) -> (i32, i32, i32) {
    %c0_i32 = arith.constant 0 : i32
    %c0_i32_0 = arith.constant 0 : i32
    %c0_i32_1 = arith.constant 0 : i32
    return %arg1, %c0_i32, %c0_i32_0 : i32, i32, i32
  }
  func.func @transform_6(%arg0: i32, %arg1: i32) -> (i32, i32, i32, i32) {
    %c0_i32 = arith.constant 0 : i32
    %c0_i32_0 = arith.constant 0 : i32
    %c0_i32_1 = arith.constant 0 : i32
    return %arg0, %arg1, %c0_i32, %c0_i32_0 : i32, i32, i32, i32
  }
}

</mosaic_0001>

<llo_original>
// kernel: _lambda_.5
$region0: #{_lambda_.5}
  #allocation0 [shape = 'u32[]', space=smem, size = 0x4, offset = 0x4, fixed_abs, tag = 'smem constant byte address 0x4 - core index']
  #allocation1 [shape = 'u32[72,128]{1,0:T(1,128)}', space=vmem, size = 0x9000, scoped, tag = 'internal scratch']
  %s0 = inlined_call_operand.vmem [shape: f32[64,24], index: 0, kind: input, shape index: {}]
  %s1 = inlined_call_operand.vmem [shape: bf16[24,256], index: 1, kind: input, shape index: {}]
  %s2 = inlined_call_operand.vmem [shape: f32[1,256], index: 2, kind: input, shape index: {}]
  %s3 = inlined_call_operand.vmem [shape: f32[64,256], index: 3, kind: output, shape index: {}]
  %s4 = sld [smem:[#allocation0]]
  $region22: #{_lambda_.5} parent=0
    _
  %s6 = ssub.s32 1, %s4
  %s7 = scalar_select 0, %s6, %s4
  // Predicated region
  $region2: #{_lambda_.5} parent=0 // pred_check
    _
  $region3: #{_lambda_.5} parent=0 // pred_check_branch
    %9 = sbr.rel (0) target = $region5
  $region4: #{_lambda_.5} parent=0 // pred_region
    _
  $region5: #{_lambda_.5} parent=0 // pred_fallthru
    _
  // Predicated region
  $region6: #{_lambda_.5} parent=0 // pred_check
    _
  $region7: #{_lambda_.5} parent=0 // pred_check_branch
    %11 = sbr.rel (0) target = $region9
  $region8: #{_lambda_.5} parent=0 // pred_region
    _
  $region9: #{_lambda_.5} parent=0 // pred_fallthru
    _
  // Predicated region
  $region10: #{_lambda_.5} parent=0 // pred_check
    _
  $region11: #{_lambda_.5} parent=0 // pred_check_branch
    %13 = sbr.rel (0) target = $region13
  $region12: #{_lambda_.5} parent=0 // pred_region
    _
  $region13: #{_lambda_.5} parent=0 // pred_fallthru
    _
  %v15 = vld [vmem:[%s0] sm:$0xff]
  %v16 = vld [vmem:[%s0 + $0x8] sm:$0xff]
  %v17 = vld [vmem:[%s0 + $0x10] sm:$0xff]
  %v18 = vld [vmem:[%s0 + $0x18] sm:$0xff]
  %v19 = vld [vmem:[%s0 + $0x20] sm:$0xff]
  %v20 = vld [vmem:[%s0 + $0x28] sm:$0xff]
  %v21 = vld [vmem:[%s0 + $0x30] sm:$0xff]
  %v22 = vld [vmem:[%s0 + $0x38] sm:$0xff]
  %v23 = vpack.c.bf16 %v16, %v15
  %v24 = vpack.c.bf16 %v18, %v17
  %v25 = vpack.c.bf16 %v20, %v19
  %v26 = vpack.c.bf16 %v22, %v21
  %v27 = vld [vmem:[%s1] sm:$0xff]
  %v28 = vld [vmem:[%s1 + $0x8] sm:$0xff]
  %v29 = vld [vmem:[%s1 + $0x10] sm:$0xff]
  %v30 = vld [vmem:[%s2] sm:$0x3]
  %v32 = vperm.slane %v30, 0
  %v33 = vperm.slane %v30, 1
  %v39 = vunpack.c.l.b16 %v27
  %v40 = vunpack.c.h.b16 %v27
  %v41 = vunpack.c.l.b16 %v28
  %v42 = vunpack.c.h.b16 %v28
  %v43 = vunpack.c.l.b16 %v29
  %v44 = vunpack.c.h.b16 %v29
  %v45 = vpack.c.b16 %v41, %v39
  %v46 = vpack.c.b16 %v42, %v40
  %v47 = vpack.c.b16 %v43, %v43
  %v48 = vpack.c.b16 %v44, %v44
  %vm51 = vcmask 195584
  %v53 = vsel %vm51, %v23, 0
  %v56 = vsel %vm51, %v24, 0
  %v59 = vsel %vm51, %v25, 0
  %v62 = vsel %vm51, %v26, 0
  %vm64 = vcmask 1043456
  %v66 = vsel %vm64, %v47, 0
  %v69 = vsel %vm64, %v48, 0
  %71 = vmatpush.bf16.msra.mxu0 0
  %72 = vmatpush.bf16.msra.mxu0 0
  %73 = vmatpush.bf16.msra.mxu0 0
  %74 = vmatpush.bf16.msra.mxu0 0
  %75 = vmatpush.bf16.msra.mxu0 0
  %76 = vmatpush.bf16.msra.mxu0 0
  %77 = vmatpush.bf16.msra.mxu0 %v66
  %78 = vmatpush.bf16.msra.mxu0 %v45
  %79 = vmatmul.bf16.gmra.mxu0 %v53
  %v80 = vpop.f32.mrf.mxu0
  %v81 = vadd.f32 %v32, %v80
  %v82 = vpop.f32.mrf.mxu0
  %v83 = vadd.f32 %v32, %v82
  %84 = vmatmul.bf16.gmra.mxu0 %v56
  %v85 = vpop.f32.mrf.mxu0
  %v86 = vadd.f32 %v32, %v85
  %v87 = vpop.f32.mrf.mxu0
  %v88 = vadd.f32 %v32, %v87
  %89 = vmatmul.bf16.gmra.mxu0 %v59
  %v90 = vpop.f32.mrf.mxu0
  %v91 = vadd.f32 %v32, %v90
  %v92 = vpop.f32.mrf.mxu0
  %v93 = vadd.f32 %v32, %v92
  %94 = vmatmul.bf16.gmra.mxu0 %v62
  %v95 = vpop.f32.mrf.mxu0
  %v96 = vadd.f32 %v32, %v95
  %v97 = vpop.f32.mrf.mxu0
  %v98 = vadd.f32 %v32, %v97
  %99 = vdwg.mxu0
  %100 = vmatpush.bf16.msra.mxu0 0
  %101 = vmatpush.bf16.msra.mxu0 0
  %102 = vmatpush.bf16.msra.mxu0 0
  %103 = vmatpush.bf16.msra.mxu0 0
  %104 = vmatpush.bf16.msra.mxu0 0
  %105 = vmatpush.bf16.msra.mxu0 0
  %106 = vmatpush.bf16.msra.mxu0 %v69
  %107 = vmatpush.bf16.msra.mxu0 %v46
  %108 = vmatmul.bf16.gmra.mxu0 %v53
  %v109 = vpop.f32.mrf.mxu0
  %v110 = vadd.f32 %v33, %v109
  %v111 = vpop.f32.mrf.mxu0
  %v112 = vadd.f32 %v33, %v111
  %113 = vmatmul.bf16.gmra.mxu0 %v56
  %v114 = vpop.f32.mrf.mxu0
  %v115 = vadd.f32 %v33, %v114
  %v116 = vpop.f32.mrf.mxu0
  %v117 = vadd.f32 %v33, %v116
  %118 = vmatmul.bf16.gmra.mxu0 %v59
  %v119 = vpop.f32.mrf.mxu0
  %v120 = vadd.f32 %v33, %v119
  %v121 = vpop.f32.mrf.mxu0
  %v122 = vadd.f32 %v33, %v121
  %123 = vmatmul.bf16.gmra.mxu0 %v62
  %v124 = vpop.f32.mrf.mxu0
  %v125 = vadd.f32 %v33, %v124
  %v126 = vpop.f32.mrf.mxu0
  %v127 = vadd.f32 %v33, %v126
  %128 = vdwg.mxu0
  %129 = vst [vmem:[%s3] sm:$0xff] %v81
  %130 = vst [vmem:[%s3 + $0x8] sm:$0xff] %v110
  %131 = vst [vmem:[%s3 + $0x10] sm:$0xff] %v83
  %132 = vst [vmem:[%s3 + $0x18] sm:$0xff] %v112
  %133 = vst [vmem:[%s3 + $0x20] sm:$0xff] %v86
  %134 = vst [vmem:[%s3 + $0x28] sm:$0xff] %v115
  %135 = vst [vmem:[%s3 + $0x30] sm:$0xff] %v88
  %136 = vst [vmem:[%s3 + $0x38] sm:$0xff] %v117
  %137 = vst [vmem:[%s3 + $0x40] sm:$0xff] %v91
  %138 = vst [vmem:[%s3 + $0x48] sm:$0xff] %v120
  %139 = vst [vmem:[%s3 + $0x50] sm:$0xff] %v93
  %140 = vst [vmem:[%s3 + $0x58] sm:$0xff] %v122
  %141 = vst [vmem:[%s3 + $0x60] sm:$0xff] %v96
  %142 = vst [vmem:[%s3 + $0x68] sm:$0xff] %v125
  %143 = vst [vmem:[%s3 + $0x70] sm:$0xff] %v98
  %144 = vst [vmem:[%s3 + $0x78] sm:$0xff] %v127
  // Predicated region
  $region14: #{_lambda_.5} parent=0 // pred_check
    _
  $region15: #{_lambda_.5} parent=0 // pred_check_branch
    %146 = sbr.rel (0) target = $region17
  $region16: #{_lambda_.5} parent=0 // pred_region
    _
  $region17: #{_lambda_.5} parent=0 // pred_fallthru
    _
  // Predicated region
  $region18: #{_lambda_.5} parent=0 // pred_check
    _
  $region19: #{_lambda_.5} parent=0 // pred_check_branch
    %148 = sbr.rel (0) target = $region21
  $region20: #{_lambda_.5} parent=0 // pred_region
    _
  $region21: #{_lambda_.5} parent=0 // pred_fallthru
    _

// kernel: _lambda_.6
$region0: #{_lambda_.6}
  #allocation0 [shape = 'u32[]', space=smem, size = 0x4, offset = 0x4, fixed_abs, tag = 'smem constant byte address 0x4 - core index']
  #allocation1 [shape = 'u32[72,128]{1,0:T(1,128)}', space=vmem, size = 0x9000, scoped, tag = 'internal scratch']
  #allocation2 [shape = 'f32[2,8,32]{2,1,0:T(8,128)}', space=vmem, size = 0x2000, scoped, tag = 'scratch operand']
  #allocation3 [shape = 'f32[2,8,32]{2,1,0:T(8,128)}', space=vmem, size = 0x2000, scoped, tag = 'scratch operand']
  %s0 = inlined_call_operand.vmem [shape: f32[8,8,256], index: 0, kind: input, shape index: {}]
  %s1 = inlined_call_operand.vmem [shape: bf16[2,32,128], index: 1, kind: input, shape index: {}]
  %s2 = inlined_call_operand.vmem [shape: f32[8,8,64], index: 2, kind: output, shape index: {}]
  %s3 = sld [smem:[#allocation0]]
  $region25: #{_lambda_.6} parent=0
    _
  %s5 = ssub.s32 1, %s3
  %s6 = scalar_select 0, %s5, %s3
  // Predicated region
  $region2: #{_lambda_.6} parent=0 // pred_check
    _
  $region3: #{_lambda_.6} parent=0 // pred_check_branch
    %8 = sbr.rel (0) target = $region5
  $region4: #{_lambda_.6} parent=0 // pred_region
    _
  $region5: #{_lambda_.6} parent=0 // pred_fallthru
    _
  // Predicated region
  $region6: #{_lambda_.6} parent=0 // pred_check
    _
  $region7: #{_lambda_.6} parent=0 // pred_check_branch
    %10 = sbr.rel (0) target = $region9
  $region8: #{_lambda_.6} parent=0 // pred_region
    _
  $region9: #{_lambda_.6} parent=0 // pred_fallthru
    _
  %vm12 = vcmask 261120
  %13 = vst.msk [vmem:[#allocation2] sm:$0xff] %vm12, 0.0
  %14 = vst.msk [vmem:[#allocation2 + $0x8] sm:$0xff] %vm12, 0.0
  %15 = vst.msk [vmem:[#allocation3] sm:$0xff] %vm12, 0.0
  %16 = vst.msk [vmem:[#allocation3 + $0x8] sm:$0xff] %vm12, 0.0
  loop: start=0, step=1, limit=8
  $region10: #{_lambda_.6} parent=0 // loop_pre_header
    _
  $region11: #{_lambda_.6} parent=0 // loop_header
    %s18 = sphi 0, %s22
    %p19 = scmp.ge.s32.totalorder %s18, 8
  $region12: #{_lambda_.6} parent=0 // loop_header_branch
    %21 = sbr.rel (%p19) target = $region16
  $region13: #{_lambda_.6} parent=0 // loop_body
    %s23 = ssub.s32 7, %s18
    %s24 = smul.u32 %s18, 2
    %s25 = smul.addr %s24, 8
    %s26 = scalar_lea.vmem %s0, %s25
    %v27 = vld [vmem:[%s26] sm:$0xff]
    %s28 = smul.u32 %s23, 2
    %s29 = smul.addr %s28, 8
    %s30 = scalar_lea.vmem %s0, %s29
    %v31 = vld [vmem:[%s30 + $0x8] sm:$0xff]
    %v32 = vld [vmem:[#allocation2] sm:$0xff]
    %v33 = vld [vmem:[#allocation2 + $0x8] sm:$0xff]
    %v34 = vpack.c.bf16 %v32, %v32
    %v35 = vpack.c.bf16 %v33, %v33
    %v36 = vld [vmem:[%s1] sm:$0xf]
    %v37 = vld [vmem:[%s1 + $0x4] sm:$0xf]
    %v38 = vld [vmem:[%s1 + $0x8] sm:$0xf]
    %v39 = vld [vmem:[%s1 + $0xc] sm:$0xf]
    %v40 = vld [vmem:[%s1 + $0x10] sm:$0xf]
    %v41 = vld [vmem:[%s1 + $0x14] sm:$0xf]
    %v42 = vld [vmem:[%s1 + $0x18] sm:$0xf]
    %v43 = vld [vmem:[%s1 + $0x1c] sm:$0xf]
    %v48 = vunpack.c.l.b16 %v36
    %v49 = vunpack.c.l.b16 %v37
    %v50 = vunpack.c.l.b16 %v38
    %v51 = vunpack.c.l.b16 %v39
    %v52 = vpack.c.b16 %v49, %v48
    %v53 = vpack.c.b16 %v51, %v50
    %v57 = vsel %vm12, %v34, 0
    %59 = vmatpush.bf16.msra.mxu0 0
    %60 = vmatpush.bf16.msra.mxu0 0
    %61 = vmatpush.bf16.msra.mxu0 0
    %62 = vmatpush.bf16.msra.mxu0 0
    %63 = vmatpush.bf16.msra.mxu0 0
    %64 = vmatpush.bf16.msra.mxu0 0
    %65 = vmatpush.bf16.msra.mxu0 %v53
    %66 = vmatpush.bf16.msra.mxu0 %v52
    %67 = vmatmul.bf16.gmra.mxu0 %v57
    %v68 = vpop.f32.mrf.mxu0
    %v69 = vadd.f32 0.0, %v68
    %v70 = vpop.f32.mrf.mxu0
    %71 = vdwg.mxu0
    %v76 = vunpack.c.l.b16 %v40
    %v77 = vunpack.c.l.b16 %v41
    %v78 = vunpack.c.l.b16 %v42
    %v79 = vunpack.c.l.b16 %v43
    %v80 = vpack.c.b16 %v77, %v76
    %v81 = vpack.c.b16 %v79, %v78
    %v85 = vsel %vm12, %v35, 0
    %87 = vmatpush.bf16.msra.mxu0 0
    %88 = vmatpush.bf16.msra.mxu0 0
    %89 = vmatpush.bf16.msra.mxu0 0
    %90 = vmatpush.bf16.msra.mxu0 0
    %91 = vmatpush.bf16.msra.mxu0 0
    %92 = vmatpush.bf16.msra.mxu0 0
    %93 = vmatpush.bf16.msra.mxu0 %v81
    %94 = vmatpush.bf16.msra.mxu0 %v80
    %95 = vmatmul.bf16.gmra.mxu0 %v85
    %v96 = vpop.f32.mrf.mxu0
    %v97 = vadd.f32 0.0, %v96
    %v98 = vpop.f32.mrf.mxu0
    %99 = vdwg.mxu0
    %v100 = vadd.f32 %v27, %v69
    %v101 = vadd.f32 %v31, %v97
    %v102 = vxor.u32 %v100, 2147483648
    %v103 = vxor.u32 %v101, 2147483648
    %v104 = vmul.f32 %v102, 1.442695
    %v105 = vpow.pop %v104
    %v106 = vmul.f32 %v103, 1.442695
    %v107 = vpow.pop %v106
    %v108 = vadd.f32 %v105, 1.0
    %v109 = vadd.f32 %v107, 1.0
    %v110 = vrcp.pop %v108
    %v111 = vmul.f32 %v108, %v110
    %v112 = vsub.f32 1.0, %v111
    %v113 = vmul.f32 %v110, %v112
    %v114 = vadd.f32 %v110, %v113
    %vm115 = vweird.f32 %v108
    %vm116 = vweird.f32 %v110
    %vm117 = vmor %vm115, %vm116
    %v118 = vsel %vm117, %v110, %v114
    %v119 = vand.u32 2147483647, %v108
    %vm120 = vcmp.eq.f32.partialorder %v119, 8.507059e+37
    %v121 = vand.u32 %v108, 2147483648
    %v122 = vor.u32 1.1754944e-38, %v121
    %v123 = vsel %vm120, %v122, %v118
    %v124 = vmul.f32 1.0, %v123
    %v125 = vrcp.pop %v109
    %v126 = vmul.f32 %v109, %v125
    %v127 = vsub.f32 1.0, %v126
    %v128 = vmul.f32 %v125, %v127
    %v129 = vadd.f32 %v125, %v128
    %vm130 = vweird.f32 %v109
    %vm131 = vweird.f32 %v125
    %vm132 = vmor %vm130, %vm131
    %v133 = vsel %vm132, %v125, %v129
    %v134 = vand.u32 2147483647, %v109
    %vm135 = vcmp.eq.f32.partialorder %v134, 8.507059e+37
    %v136 = vand.u32 %v109, 2147483648
    %v137 = vor.u32 1.1754944e-38, %v136
    %v138 = vsel %vm135, %v137, %v133
    %v139 = vmul.f32 1.0, %v138
    %v140 = vtanh.pop %v100
    %v141 = vtanh.pop %v101
    %v142 = vld [vmem:[#allocation3] sm:$0xff]
    %v143 = vld [vmem:[#allocation3 + $0x8] sm:$0xff]
    %146 = vrot.lane.b32.xlu0 %v142, 32
    %v147 = vpop.permute.xlu0 %146
    %148 = vrot.lane.b32.xlu0 %v143, 32
    %v149 = vpop.permute.xlu0 %148
    %v152 = vmul.f32 %v124, %v147
    %v153 = vmul.f32 %v139, %v149
    %156 = vrot.lane.b32.xlu0 %v140, 32
    %v157 = vpop.permute.xlu0 %156
    %158 = vrot.lane.b32.xlu0 %v141, 32
    %v159 = vpop.permute.xlu0 %158
    %v162 = vmul.f32 %v124, %v157
    %v163 = vmul.f32 %v139, %v159
    %166 = vrot.lane.b32.xlu0 %v162, 32
    %v167 = vpop.permute.xlu0 %166
    %168 = vrot.lane.b32.xlu0 %v163, 32
    %v169 = vpop.permute.xlu0 %168
    %v172 = vadd.f32 %v152, %v167
    %v173 = vadd.f32 %v153, %v169
    %v174 = vtanh.pop %v172
    %v175 = vtanh.pop %v173
    %178 = vrot.lane.b32.xlu0 %v174, 32
    %v179 = vpop.permute.xlu0 %178
    %180 = vrot.lane.b32.xlu0 %v175, 32
    %v181 = vpop.permute.xlu0 %180
    %v184 = vmul.f32 %v124, %v179
    %v185 = vmul.f32 %v139, %v181
    %188 = vrot.lane.b32.xlu0 %v172, 96
    %v189 = vpop.permute.xlu0 %188
    %190 = vrot.lane.b32.xlu0 %v173, 96
    %v191 = vpop.permute.xlu0 %190
    %194 = vst.msk [vmem:[#allocation3] sm:$0xff] %vm12, %v189
    %195 = vst.msk [vmem:[#allocation3 + $0x8] sm:$0xff] %vm12, %v191
    %198 = vrot.lane.b32.xlu0 %v184, 64
    %v199 = vpop.permute.xlu0 %198
    %200 = vrot.lane.b32.xlu0 %v185, 64
    %v201 = vpop.permute.xlu0 %200
    %204 = vst.msk [vmem:[#allocation2] sm:$0xff] %vm12, %v199
    %205 = vst.msk [vmem:[#allocation2 + $0x8] sm:$0xff] %vm12, %v201
    %s206 = smul.u32 %s18, 8
    %s207 = scalar_lea.vmem %s2, %s206
    %208 = vst.msk [vmem:[%s207] sm:$0xff] %vm12, %v199
    %209 = vrot.lane.b32.xlu0 %v185, 96
    %v210 = vpop.permute.xlu0 %209
    %s212 = smul.u32 %s23, 8
    %s213 = scalar_lea.vmem %s2, %s212
    %vm214 = vcmask 523520
    %215 = vst.msk [vmem:[%s213] sm:$0xff] %vm214, %v210
  $region14: #{_lambda_.6} parent=0 // loop_footer
    %s22 = sadd.s32 1, %s18
  $region15: #{_lambda_.6} parent=0 // loop_footer_branch
    %17 = sbr.rel target = $region11
  $region16: #{_lambda_.6} parent=0 // loop_exit
    _
  // Predicated region
  $region17: #{_lambda_.6} parent=0 // pred_check
    _
  $region18: #{_lambda_.6} parent=0 // pred_check_branch
    %217 = sbr.rel (0) target = $region20
  $region19: #{_lambda_.6} parent=0 // pred_region
    _
  $region20: #{_lambda_.6} parent=0 // pred_fallthru
    _
  // Predicated region
  $region21: #{_lambda_.6} parent=0 // pred_check
    _
  $region22: #{_lambda_.6} parent=0 // pred_check_branch
    %219 = sbr.rel (0) target = $region24
  $region23: #{_lambda_.6} parent=0 // pred_region
    _
  $region24: #{_lambda_.6} parent=0 // pred_fallthru
    _

// kernel: _lambda_.8
$region0: #{_lambda_.8}
  #allocation0 [shape = 'u32[]', space=smem, size = 0x4, offset = 0x4, fixed_abs, tag = 'smem constant byte address 0x4 - core index']
  #allocation1 [shape = 'u32[72,128]{1,0:T(1,128)}', space=vmem, size = 0x9000, scoped, tag = 'internal scratch']
  #allocation2 [shape = 'f32[1,1,1]{2,1,0:T(1,128)S(1)}', space=vmem, size = 0x200, scoped, tag = 'scoped memory for _lambda_.8']
  %s0 = inlined_call_operand.vmem [shape: f32[8,8,32], index: 0, kind: input, shape index: {}]
  %s1 = inlined_call_operand.vmem [shape: f32[8,8,32], index: 1, kind: input, shape index: {}]
  %s2 = inlined_call_operand.vmem [shape: bf16[1,32,32], index: 2, kind: input, shape index: {}]
  %s3 = inlined_call_operand.vmem [shape: bf16[1,32,1], index: 3, kind: input, shape index: {}]
  %s4 = inlined_call_operand.vmem [shape: bf16[1,1,32], index: 4, kind: input, shape index: {}]
  %s5 = inlined_call_operand.<no memory space> [shape: f32[1,1,1], index: 5, kind: input, shape index: {}]
  %s6 = inlined_call_operand.hbm [shape: f32[2,1,8,8], index: 6, kind: output, shape index: {}]
  %s7 = sld [smem:[#allocation0]]
  $region57: #{_lambda_.8} parent=0
    _
  %s9 = ssub.s32 1, %s7
  %s10 = scalar_select 0, %s9, %s7
  %v11 = vstv %s5
  %12 = vst [vmem:[#allocation2] sm:$0x1] %v11
  $region1: #{_lambda_.8} parent=0
    #allocation3 [shape = 'u8[8192]{0}', space=vmem, size = 0x2000, scoped, tag = 'output window, operand 0']
    #allocation4 [shape = 's32[2]{0}', space=sflag, size = 0x8, scoped, tag = 'scoped memory for _lambda_.8']
    %13 = vsyncpa [#allocation4], 0
    %s14 = scalar_lea.sflag [#allocation4], 1
    %15 = vsyncpa %s14, 0
    loop: start=0, step=1, limit=4
    $region2: #{_lambda_.8} parent=1 // loop_pre_header
      _
    $region3: #{_lambda_.8} parent=1 // loop_header
      %s17 = sphi 0, %s21
      %p18 = scmp.ge.s32.totalorder %s17, 4
      %s24 = sphi 0, %s36
      %s25 = sphi 0, %s32
      %s26 = sphi 0, %s24
      %s27 = sphi 0, %s25
      %s28 = sphi 0, %s26
      %s29 = sphi 0, %s27
      %s39 = sphi 0, %s41
      %s42 = sphi 0, %s39
      %s43 = sphi 0, %s42
      %s59 = sphi 0, %s43
      %s65 = sphi 0, %s67
      %s68 = sphi 0, %s65
      %s69 = sphi 0, %s68
      %s85 = sphi 0, %s69
      %s91 = sphi 0, %s93
      %s94 = sphi 0, %s91
      %s95 = sphi 0, %s94
      %s111 = sphi 0, %s95
      %s117 = sphi 0, %s119
      %s120 = sphi 0, %s117
      %s121 = sphi 0, %s120
      %s137 = sphi 0, %s121
      %s143 = sphi 0, %s145
      %s146 = sphi 0, %s143
      %s147 = sphi 0, %s146
      %s163 = sphi 0, %s147
      %s169 = sphi 0, %s171
      %s172 = sphi 0, %s169
      %s173 = sphi 0, %s172
      %s189 = sphi 0, %s173
      %s197 = sphi 0, %s199
      %s200 = sphi 0, %s197
      %s201 = sphi 0, %s200
      %s217 = sphi 0, %s201
    $region4: #{_lambda_.8} parent=1 // loop_header_branch
      %20 = sbr.rel (%p18) target = $region8
    $region5: #{_lambda_.8} parent=1 // loop_body
      %s22 = ssub.s32 %s17, 1
      %s23 = ssub.s32 %s17, 2
      %s30 = sadd.s32 1, %s25
      %p31 = scmp.ge.s32.totalorder %s30, 1
      %s32 = scalar_select %p31, 0, %s30
      %s33 = sadd.s32 1, %s24
      %s34 = scalar_select %p31, %s33, %s24
      %p35 = scmp.ge.s32.totalorder %s34, 2
      %s36 = scalar_select %p35, 0, %s34
      %s37 = ssub.s32 %s24, %s36
      %p38 = scmp.eq.s32.totalorder %s37, 0
      %s40 = sadd.s32 %s39, 1
      %s41 = scalar_select %p38, %s39, %s40
      %p44 = pneg %p38
      %p45 = scmp.eq.s32.totalorder %s17, 1
      %p46 = por %p44, %p45
      %p47 = scmp.ne.s32.totalorder %s39, %s42
      %p48 = scmp.eq.s32.totalorder %s17, 0
      %p49 = por %p47, %p48
      %p50 = scmp.ne.s32.totalorder %s39, %s42
      %p51 = scmp.eq.s32.totalorder %s22, 1
      %p52 = por %p50, %p51
      %p53 = scmp.ne.s32.totalorder %s42, %s43
      %p54 = scmp.eq.s32.totalorder %s22, 0
      %p55 = por %p53, %p54
      %p56 = scmp.ne.s32.totalorder %s42, %s43
      %p57 = scmp.eq.s32.totalorder %s23, 1
      %p58 = por %p56, %p57
      %p60 = scmp.ne.s32.totalorder %s43, %s59
      %p61 = scmp.eq.s32.totalorder %s23, 0
      %p62 = por %p60, %p61
      %s63 = ssub.s32 %s24, %s36
      %p64 = scmp.eq.s32.totalorder %s63, 0
      %s66 = sadd.s32 %s65, 1
      %s67 = scalar_select %p64, %s65, %s66
      %p70 = pneg %p64
      %p71 = scmp.eq.s32.totalorder %s17, 1
      %p72 = por %p70, %p71
      %p73 = scmp.ne.s32.totalorder %s65, %s68
      %p74 = scmp.eq.s32.totalorder %s17, 0
      %p75 = por %p73, %p74
      %p76 = scmp.ne.s32.totalorder %s65, %s68
      %p77 = scmp.eq.s32.totalorder %s22, 1
      %p78 = por %p76, %p77
      %p79 = scmp.ne.s32.totalorder %s68, %s69
      %p80 = scmp.eq.s32.totalorder %s22, 0
      %p81 = por %p79, %p80
      %p82 = scmp.ne.s32.totalorder %s68, %s69
      %p83 = scmp.eq.s32.totalorder %s23, 1
      %p84 = por %p82, %p83
      %p86 = scmp.ne.s32.totalorder %s69, %s85
      %p87 = scmp.eq.s32.totalorder %s23, 0
      %p88 = por %p86, %p87
      %s89 = ssub.s32 %s25, %s32
      %p90 = scmp.eq.s32.totalorder %s89, 0
      %s92 = sadd.s32 %s91, 1
      %s93 = scalar_select %p90, %s91, %s92
      %p96 = pneg %p90
      %p97 = scmp.eq.s32.totalorder %s17, 1
      %p98 = por %p96, %p97
      %p99 = scmp.ne.s32.totalorder %s91, %s94
      %p100 = scmp.eq.s32.totalorder %s17, 0
      %p101 = por %p99, %p100
      %p102 = scmp.ne.s32.totalorder %s91, %s94
      %p103 = scmp.eq.s32.totalorder %s22, 1
      %p104 = por %p102, %p103
      %p105 = scmp.ne.s32.totalorder %s94, %s95
      %p106 = scmp.eq.s32.totalorder %s22, 0
      %p107 = por %p105, %p106
      %p108 = scmp.ne.s32.totalorder %s94, %s95
      %p109 = scmp.eq.s32.totalorder %s23, 1
      %p110 = por %p108, %p109
      %p112 = scmp.ne.s32.totalorder %s95, %s111
      %p113 = scmp.eq.s32.totalorder %s23, 0
      %p114 = por %p112, %p113
      %s115 = ssub.s32 %s25, %s32
      %p116 = scmp.eq.s32.totalorder %s115, 0
      %s118 = sadd.s32 %s117, 1
      %s119 = scalar_select %p116, %s117, %s118
      %p122 = pneg %p116
      %p123 = scmp.eq.s32.totalorder %s17, 1
      %p124 = por %p122, %p123
      %p125 = scmp.ne.s32.totalorder %s117, %s120
      %p126 = scmp.eq.s32.totalorder %s17, 0
      %p127 = por %p125, %p126
      %p128 = scmp.ne.s32.totalorder %s117, %s120
      %p129 = scmp.eq.s32.totalorder %s22, 1
      %p130 = por %p128, %p129
      %p131 = scmp.ne.s32.totalorder %s120, %s121
      %p132 = scmp.eq.s32.totalorder %s22, 0
      %p133 = por %p131, %p132
      %p134 = scmp.ne.s32.totalorder %s120, %s121
      %p135 = scmp.eq.s32.totalorder %s23, 1
      %p136 = por %p134, %p135
      %p138 = scmp.ne.s32.totalorder %s121, %s137
      %p139 = scmp.eq.s32.totalorder %s23, 0
      %p140 = por %p138, %p139
      %s141 = ssub.s32 %s25, %s32
      %p142 = scmp.eq.s32.totalorder %s141, 0
      %s144 = sadd.s32 %s143, 1
      %s145 = scalar_select %p142, %s143, %s144
      %p148 = pneg %p142
      %p149 = scmp.eq.s32.totalorder %s17, 1
      %p150 = por %p148, %p149
      %p151 = scmp.ne.s32.totalorder %s143, %s146
      %p152 = scmp.eq.s32.totalorder %s17, 0
      %p153 = por %p151, %p152
      %p154 = scmp.ne.s32.totalorder %s143, %s146
      %p155 = scmp.eq.s32.totalorder %s22, 1
      %p156 = por %p154, %p155
      %p157 = scmp.ne.s32.totalorder %s146, %s147
      %p158 = scmp.eq.s32.totalorder %s22, 0
      %p159 = por %p157, %p158
      %p160 = scmp.ne.s32.totalorder %s146, %s147
      %p161 = scmp.eq.s32.totalorder %s23, 1
      %p162 = por %p160, %p161
      %p164 = scmp.ne.s32.totalorder %s147, %s163
      %p165 = scmp.eq.s32.totalorder %s23, 0
      %p166 = por %p164, %p165
      %s167 = ssub.s32 %s25, %s32
      %p168 = scmp.eq.s32.totalorder %s167, 0
      %s170 = sadd.s32 %s169, 1
      %s171 = scalar_select %p168, %s169, %s170
      %p174 = pneg %p168
      %p175 = scmp.eq.s32.totalorder %s17, 1
      %p176 = por %p174, %p175
      %p177 = scmp.ne.s32.totalorder %s169, %s172
      %p178 = scmp.eq.s32.totalorder %s17, 0
      %p179 = por %p177, %p178
      %p180 = scmp.ne.s32.totalorder %s169, %s172
      %p181 = scmp.eq.s32.totalorder %s22, 1
      %p182 = por %p180, %p181
      %p183 = scmp.ne.s32.totalorder %s172, %s173
      %p184 = scmp.eq.s32.totalorder %s22, 0
      %p185 = por %p183, %p184
      %p186 = scmp.ne.s32.totalorder %s172, %s173
      %p187 = scmp.eq.s32.totalorder %s23, 1
      %p188 = por %p186, %p187
      %p190 = scmp.ne.s32.totalorder %s173, %s189
      %p191 = scmp.eq.s32.totalorder %s23, 0
      %p192 = por %p190, %p191
      %s193 = ssub.s32 %s24, %s36
      %s194 = ssub.s32 %s25, %s32
      %s195 = sor.u32 %s193, %s194
      %p196 = scmp.eq.s32.totalorder %s195, 0
      %s198 = sadd.s32 %s197, 1
      %s199 = scalar_select %p196, %s197, %s198
      %p202 = pneg %p196
      %p203 = scmp.eq.s32.totalorder %s17, 1
      %p204 = por %p202, %p203
      %p205 = scmp.ne.s32.totalorder %s197, %s200
      %p206 = scmp.eq.s32.totalorder %s17, 0
      %p207 = por %p205, %p206
      %p208 = scmp.ne.s32.totalorder %s197, %s200
      %p209 = scmp.eq.s32.totalorder %s22, 1
      %p210 = por %p208, %p209
      %p211 = scmp.ne.s32.totalorder %s200, %s201
      %p212 = scmp.eq.s32.totalorder %s22, 0
      %p213 = por %p211, %p212
      %p214 = scmp.ne.s32.totalorder %s200, %s201
      %p215 = scmp.eq.s32.totalorder %s23, 1
      %p216 = por %p214, %p215
      %p218 = scmp.ne.s32.totalorder %s201, %s217
      %p219 = scmp.eq.s32.totalorder %s23, 0
      %p220 = por %p218, %p219
      %p221 = scmp.le.s32.totalorder 1, %s17
      %p222 = scmp.lt.s32.totalorder %s17, 3
      %p223 = pnand %p221, %p222
      %p224 = pneg %p223
      // Predicated region
      $region9: #{_lambda_.8} parent=5 // pred_check
        _
      $region10: #{_lambda_.8} parent=5 // pred_check_branch
        %226 = sbr.rel (%p223) target = $region12
      $region11: #{_lambda_.8} parent=5 // pred_region
        %s227 = ssub.s32 %s17, 1
        // Predicated region
        $region13: #{_lambda_.8} parent=11 // pred_check
          %p228 = pneg %p107
        $region14: #{_lambda_.8} parent=11 // pred_check_branch
          %230 = sbr.rel (%p228) target = $region16
        $region15: #{_lambda_.8} parent=11 // pred_region
          %p231 = scmp.lt.s32.totalorder %s27, 0
          %s232 = scalar_select %p231, %s27, 0
          %s233 = smul.addr %s232, 4
          %s234 = smul.addr %s233, 4
          %s235 = scalar_lea.vmem %s2, %s234
        $region16: #{_lambda_.8} parent=11 // pred_fallthru
          _
        // Predicated region
        $region17: #{_lambda_.8} parent=11 // pred_check
          %p236 = pneg %p133
        $region18: #{_lambda_.8} parent=11 // pred_check_branch
          %238 = sbr.rel (%p236) target = $region20
        $region19: #{_lambda_.8} parent=11 // pred_region
          %p239 = scmp.lt.s32.totalorder %s27, 0
          %s240 = scalar_select %p239, %s27, 0
          %s241 = smul.addr %s240, 4
          %s242 = smul.addr %s241, 4
          %s243 = scalar_lea.vmem %s3, %s242
        $region20: #{_lambda_.8} parent=11 // pred_fallthru
          _
        // Predicated region
        $region21: #{_lambda_.8} parent=11 // pred_check
          %p244 = pneg %p159
        $region22: #{_lambda_.8} parent=11 // pred_check_branch
          %246 = sbr.rel (%p244) target = $region24
        $region23: #{_lambda_.8} parent=11 // pred_region
          %p247 = scmp.lt.s32.totalorder %s27, 0
          %s248 = scalar_select %p247, %s27, 0
          %s249 = scalar_lea.vmem %s4, %s248
        $region24: #{_lambda_.8} parent=11 // pred_fallthru
          _
        // Predicated region
        $region25: #{_lambda_.8} parent=11 // pred_check
          %p250 = pneg %p185
        $region26: #{_lambda_.8} parent=11 // pred_check_branch
          %252 = sbr.rel (%p250) target = $region28
        $region27: #{_lambda_.8} parent=11 // pred_region
          %p253 = scmp.lt.s32.totalorder %s27, 0
          %s254 = scalar_select %p253, %s27, 0
          %s255 = scalar_lea.vmem [#allocation2], %s254
        $region28: #{_lambda_.8} parent=11 // pred_fallthru
          _
      $region12: #{_lambda_.8} parent=5 // pred_fallthru
        _
      %p256 = scmp.lt.s32.totalorder %s17, 2
      // Predicated region
      $region29: #{_lambda_.8} parent=5 // pred_check
        %p257 = pneg %p256
      $region30: #{_lambda_.8} parent=5 // pred_check_branch
        %259 = sbr.rel (%p257) target = $region32
      $region31: #{_lambda_.8} parent=5 // pred_region
        // Predicated region
        $region33: #{_lambda_.8} parent=31 // pred_check
          %p260 = pneg %p49
        $region34: #{_lambda_.8} parent=31 // pred_check_branch
          %262 = sbr.rel (%p260) target = $region36
        $region35: #{_lambda_.8} parent=31 // pred_region
          %p263 = scmp.lt.s32.totalorder %s24, 7
          %s264 = scalar_select %p263, %s24, 7
          %s265 = smul.addr %s264, 8
          %s266 = scalar_lea.vmem %s0, %s265
        $region36: #{_lambda_.8} parent=31 // pred_fallthru
          _
        // Predicated region
        $region37: #{_lambda_.8} parent=31 // pred_check
          %p267 = pneg %p75
        $region38: #{_lambda_.8} parent=31 // pred_check_branch
          %269 = sbr.rel (%p267) target = $region40
        $region39: #{_lambda_.8} parent=31 // pred_region
          %p270 = scmp.lt.s32.totalorder %s24, 7
          %s271 = scalar_select %p270, %s24, 7
          %s272 = smul.addr %s271, 8
          %s273 = scalar_lea.vmem %s1, %s272
        $region40: #{_lambda_.8} parent=31 // pred_fallthru
          _
      $region32: #{_lambda_.8} parent=5 // pred_fallthru
        _
      %p274 = scmp.le.s32.totalorder 1, %s17
      %p275 = scmp.lt.s32.totalorder %s17, 3
      %p276 = pnand %p274, %p275
      %p277 = pneg %p276
      // Predicated region
      $region41: #{_lambda_.8} parent=5 // pred_check
        _
      $region42: #{_lambda_.8} parent=5 // pred_check_branch
        %279 = sbr.rel (%p276) target = $region44
      $region43: #{_lambda_.8} parent=5 // pred_region
        %s280 = ssub.s32 %s17, 1
        %p281 = scmp.lt.s32.totalorder %s26, 7
        %s282 = scalar_select %p281, %s26, 7
        %s283 = smul.addr %s282, 8
        %s284 = scalar_lea.vmem %s0, %s283
        %p285 = pneg %p55
        %p286 = pneg %p52
        %p287 = scmp.lt.s32.totalorder %s26, 7
        %s288 = scalar_select %p287, %s26, 7
        %s289 = smul.addr %s288, 8
        %s290 = scalar_lea.vmem %s1, %s289
        %p291 = pneg %p81
        %p292 = pneg %p78
        %p293 = scmp.lt.s32.totalorder %s27, 0
        %s294 = scalar_select %p293, %s27, 0
        %s295 = smul.addr %s294, 4
        %s296 = smul.addr %s295, 4
        %s297 = scalar_lea.vmem %s2, %s296
        %p298 = pneg %p107
        %p299 = pneg %p104
        %p300 = scmp.lt.s32.totalorder %s27, 0
        %s301 = scalar_select %p300, %s27, 0
        %s302 = smul.addr %s301, 4
        %s303 = smul.addr %s302, 4
        %s304 = scalar_lea.vmem %s3, %s303
        %p305 = pneg %p133
        %p306 = pneg %p130
        %p307 = scmp.lt.s32.totalorder %s27, 0
        %s308 = scalar_select %p307, %s27, 0
        %s309 = scalar_lea.vmem %s4, %s308
        %p310 = pneg %p159
        %p311 = pneg %p156
        %p312 = scmp.lt.s32.totalorder %s27, 0
        %s313 = scalar_select %p312, %s27, 0
        %s314 = scalar_lea.vmem [#allocation2], %s313
        %p315 = pneg %p185
        %p316 = pneg %p182
        %p317 = pneg %p213
        %p318 = pneg %p210
        %s319 = sand.u32 %s200, 1
        %s320 = scalar_lea.sflag [#allocation4], %s319
        %s321 = sand.u32 %s200, 1
        %s322 = smul.addr %s321, 8
        %s323 = scalar_lea.vmem [#allocation3], %s322
        %p324 = scmp.lt.s32.totalorder %s26, 7
        %s325 = scalar_select %p324, %s26, 7
        %s326 = smul.addr %s325, 8
        %s327 = scalar_lea.vmem %s0, %s326
        %p328 = scmp.lt.s32.totalorder %s26, 7
        %s329 = scalar_select %p328, %s26, 7
        %s330 = smul.addr %s329, 8
        %s331 = scalar_lea.vmem %s1, %s330
        %p332 = scmp.lt.s32.totalorder %s27, 0
        %s333 = scalar_select %p332, %s27, 0
        %s334 = smul.addr %s333, 4
        %s335 = smul.addr %s334, 4
        %s336 = scalar_lea.vmem %s2, %s335
        %p337 = scmp.lt.s32.totalorder %s27, 0
        %s338 = scalar_select %p337, %s27, 0
        %s339 = smul.addr %s338, 4
        %s340 = smul.addr %s339, 4
        %s341 = scalar_lea.vmem %s3, %s340
        %p342 = scmp.lt.s32.totalorder %s27, 0
        %s343 = scalar_select %p342, %s27, 0
        %s344 = scalar_lea.vmem %s4, %s343
        %p345 = scmp.lt.s32.totalorder %s27, 0
        %s346 = scalar_select %p345, %s27, 0
        %s347 = scalar_lea.vmem [#allocation2], %s346
        %v349 = vld [vmem:[%s327] sm:$0xff]
        %v350 = vpack.c.bf16 %v349, %v349
        %v351 = vld [vmem:[%s331] sm:$0xff]
        %v352 = vpack.c.bf16 %v351, %v351
        %v353 = vld [vmem:[%s336] sm:$0xf]
        %v354 = vld [vmem:[%s336 + $0x4] sm:$0xf]
        %v355 = vld [vmem:[%s336 + $0x8] sm:$0xf]
        %v356 = vld [vmem:[%s336 + $0xc] sm:$0xf]
        %v361 = vunpack.c.l.b16 %v353
        %v362 = vunpack.c.l.b16 %v354
        %v363 = vunpack.c.l.b16 %v355
        %v364 = vunpack.c.l.b16 %v356
        %v365 = vpack.c.b16 %v362, %v361
        %v366 = vpack.c.b16 %v364, %v363
        %vm369 = vcmask 261120
        %v371 = vsel %vm369, %v352, 0
        %373 = vmatpush.bf16.msra.mxu0 0
        %374 = vmatpush.bf16.msra.mxu0 0
        %375 = vmatpush.bf16.msra.mxu0 0
        %376 = vmatpush.bf16.msra.mxu0 0
        %377 = vmatpush.bf16.msra.mxu0 0
        %378 = vmatpush.bf16.msra.mxu0 0
        %379 = vmatpush.bf16.msra.mxu0 %v366
        %380 = vmatpush.bf16.msra.mxu0 %v365
        %381 = vmatmul.bf16.gmra.mxu0 %v371
        %v382 = vpop.f32.mrf.mxu0
        %v383 = vadd.f32 0.0, %v382
        %v384 = vpop.f32.mrf.mxu0
        %385 = vdwg.mxu0
        %v386 = vpack.c.bf16 %v383, %v383
        %v387 = vld [vmem:[%s341] sm:$0xf]
        %v388 = vld [vmem:[%s341 + $0x4] sm:$0xf]
        %v389 = vld [vmem:[%s341 + $0x8] sm:$0xf]
        %v390 = vld [vmem:[%s341 + $0xc] sm:$0xf]
        %v395 = vunpack.c.l.b16 %v387
        %v396 = vunpack.c.l.b16 %v388
        %v397 = vunpack.c.l.b16 %v389
        %v398 = vunpack.c.l.b16 %v390
        %v399 = vpack.c.b16 %v396, %v395
        %v400 = vpack.c.b16 %v398, %v397
        %403 = vmatpush.bf16.msra.mxu0 0
        %404 = vmatpush.bf16.msra.mxu0 0
        %405 = vmatpush.bf16.msra.mxu0 0
        %406 = vmatpush.bf16.msra.mxu0 0
        %407 = vmatpush.bf16.msra.mxu0 0
        %408 = vmatpush.bf16.msra.mxu0 0
        %409 = vmatpush.bf16.msra.mxu0 %v400
        %410 = vmatpush.bf16.msra.mxu0 %v399
        %411 = vmatmul.bf16.gmra.mxu0 %v371
        %v412 = vpop.f32.mrf.mxu0
        %v413 = vadd.f32 0.0, %v412
        %v414 = vpop.f32.mrf.mxu0
        %415 = vdwg.mxu0
        %v416 = vld [vmem:[%s344] sm:$0x1]
        %v418 = vsel %vm369, %v416, 0
        %v421 = vsel %vm369, %v350, 0
        %423 = vmatpush.bf16.xpose.msra.mxu0 0
        %424 = vmatpush.bf16.xpose.msra.mxu0 0
        %425 = vmatpush.bf16.xpose.msra.mxu0 0
        %426 = vmatpush.bf16.xpose.msra.mxu0 0
        %427 = vmatpush.bf16.xpose.msra.mxu0 0
        %428 = vmatpush.bf16.xpose.msra.mxu0 0
        %429 = vmatpush.bf16.xpose.msra.mxu0 0
        %430 = vmatpush.bf16.xpose.msra.mxu0 %v421
        %431 = vmatmul.bf16.gmra.mxu0 %v418
        %v432 = vpop.f32.mrf.mxu0
        %v433 = vadd.f32 0.0, %v432
        %v434 = vpop.f32.mrf.mxu0
        %435 = vdwg.mxu0
        %437 = vset.pattern.permute.xlu0 0
        %438 = vperm.xlu0 %437, %v413
        %v439 = vpop.permute.xlu0 %438
        %v442 = vsel %vm369, %v386, 0
        %444 = vmatpush.bf16.xpose.msra.mxu0 0
        %445 = vmatpush.bf16.xpose.msra.mxu0 0
        %446 = vmatpush.bf16.xpose.msra.mxu0 0
        %447 = vmatpush.bf16.xpose.msra.mxu0 0
        %448 = vmatpush.bf16.xpose.msra.mxu0 0
        %449 = vmatpush.bf16.xpose.msra.mxu0 0
        %450 = vmatpush.bf16.xpose.msra.mxu0 0
        %451 = vmatpush.bf16.xpose.msra.mxu0 %v421
        %452 = vmatmul.bf16.gmra.mxu0 %v442
        %v453 = vpop.f32.mrf.mxu0
        %v454 = vadd.f32 %v439, %v453
        %v455 = vpop.f32.mrf.mxu0
        %456 = vdwg.mxu0
        %v457 = vperm.slane %v433, 0
        %v458 = vadd.f32 %v454, %v457
        %v459 = vld [vmem:[%s347] sm:$0x1]
        %v461 = vperm.slane %v459, 0
        %462 = vset.pattern.permute.xlu0 0
        %463 = vperm.xlu0 %462, %v461
        %v464 = vpop.permute.xlu0 %463
        %v466 = vadd.f32 %v458, %v464
        %vm467 = vcmask 64512
        %468 = vst.msk [vmem:[%s323] sm:$0xff] %vm467, %v466
        %s469 = sand.u32 %s200, 1
        %s470 = scalar_lea.sflag [#allocation4], %s469
        %s471 = sand.u32 %s200, 1
        %s472 = smul.addr %s471, 8
        %s473 = scalar_lea.vmem [#allocation3], %s472
        // Predicated region
        $region45: #{_lambda_.8} parent=43 // pred_check
          %p474 = pneg %p210
        $region46: #{_lambda_.8} parent=43 // pred_check_branch
          %476 = sbr.rel (%p474) target = $region48
        $region47: #{_lambda_.8} parent=43 // pred_region
          %478 = vsyncadd %s470, 0
          %s479 = sadd.s32 %s27, %s26
          %s480 = smul.addr %s479, 8
          %s481 = scalar_lea.hbm %s6, %s480
          %s483 = sshll.u32 %s473, 4
          %s484 = int_to_ptr.vmem [resolvable:$true] %s483
          %s485 = sshll.u32 %s481, 4
          %s486 = int_to_ptr.hbm [resolvable:$true] %s485
          %488 = dma.vmem_to_hbm [thread:$0]  %s484, 128, %s486, %s470
        $region48: #{_lambda_.8} parent=43 // pred_fallthru
          _
      $region44: #{_lambda_.8} parent=5 // pred_fallthru
        _
      %p489 = scmp.le.s32.totalorder 2, %s17
      // Predicated region
      $region49: #{_lambda_.8} parent=5 // pred_check
        %p490 = pneg %p489
      $region50: #{_lambda_.8} parent=5 // pred_check_branch
        %492 = sbr.rel (%p490) target = $region52
      $region51: #{_lambda_.8} parent=5 // pred_region
        %s493 = ssub.s32 %s17, 2
        // Predicated region
        $region53: #{_lambda_.8} parent=51 // pred_check
          %p494 = pneg %p216
        $region54: #{_lambda_.8} parent=51 // pred_check_branch
          %496 = sbr.rel (%p494) target = $region56
        $region55: #{_lambda_.8} parent=51 // pred_region
          %s497 = sand.u32 %s201, 1
          %s498 = scalar_lea.sflag [#allocation4], %s497
          %s499 = sand.u32 %s201, 1
          %s500 = smul.addr %s499, 8
          %s501 = scalar_lea.vmem [#allocation3], %s500
          %503 = dma.done %s498, 128
        $region56: #{_lambda_.8} parent=51 // pred_fallthru
          _
      $region52: #{_lambda_.8} parent=5 // pred_fallthru
        _
    $region6: #{_lambda_.8} parent=1 // loop_footer
      %s21 = sadd.s32 1, %s17
    $region7: #{_lambda_.8} parent=1 // loop_footer_branch
      %16 = sbr.rel target = $region3
    $region8: #{_lambda_.8} parent=1 // loop_exit
      _
    %504 = vsyncpa [#allocation4], 1
    %s505 = scalar_lea.sflag [#allocation4], 1
    %506 = vsyncpa %s505, 1

// kernel: _lambda_.7
$region0: #{_lambda_.7}
  #allocation0 [shape = 'u32[]', space=smem, size = 0x4, offset = 0x4, fixed_abs, tag = 'smem constant byte address 0x4 - core index']
  #allocation1 [shape = 'u32[72,128]{1,0:T(1,128)}', space=vmem, size = 0x9000, scoped, tag = 'internal scratch']
  %s0 = inlined_call_operand.vmem [shape: f32[64,64], index: 0, kind: input, shape index: {}]
  %s1 = inlined_call_operand.vmem [shape: bf16[64,96], index: 1, kind: input, shape index: {}]
  %s2 = inlined_call_operand.vmem [shape: f32[1,96], index: 2, kind: input, shape index: {}]
  %s3 = inlined_call_operand.vmem [shape: f32[64,96], index: 3, kind: output, shape index: {}]
  %s4 = sld [smem:[#allocation0]]
  $region22: #{_lambda_.7} parent=0
    _
  %s6 = ssub.s32 1, %s4
  %s7 = scalar_select 0, %s6, %s4
  // Predicated region
  $region2: #{_lambda_.7} parent=0 // pred_check
    _
  $region3: #{_lambda_.7} parent=0 // pred_check_branch
    %9 = sbr.rel (0) target = $region5
  $region4: #{_lambda_.7} parent=0 // pred_region
    _
  $region5: #{_lambda_.7} parent=0 // pred_fallthru
    _
  // Predicated region
  $region6: #{_lambda_.7} parent=0 // pred_check
    _
  $region7: #{_lambda_.7} parent=0 // pred_check_branch
    %11 = sbr.rel (0) target = $region9
  $region8: #{_lambda_.7} parent=0 // pred_region
    _
  $region9: #{_lambda_.7} parent=0 // pred_fallthru
    _
  // Predicated region
  $region10: #{_lambda_.7} parent=0 // pred_check
    _
  $region11: #{_lambda_.7} parent=0 // pred_check_branch
    %13 = sbr.rel (0) target = $region13
  $region12: #{_lambda_.7} parent=0 // pred_region
    _
  $region13: #{_lambda_.7} parent=0 // pred_fallthru
    _
  %v15 = vld [vmem:[%s0] sm:$0xff]
  %v16 = vld [vmem:[%s0 + $0x8] sm:$0xff]
  %v17 = vld [vmem:[%s0 + $0x10] sm:$0xff]
  %v18 = vld [vmem:[%s0 + $0x18] sm:$0xff]
  %v19 = vld [vmem:[%s0 + $0x20] sm:$0xff]
  %v20 = vld [vmem:[%s0 + $0x28] sm:$0xff]
  %v21 = vld [vmem:[%s0 + $0x30] sm:$0xff]
  %v22 = vld [vmem:[%s0 + $0x38] sm:$0xff]
  %v23 = vpack.c.bf16 %v16, %v15
  %v24 = vpack.c.bf16 %v18, %v17
  %v25 = vpack.c.bf16 %v20, %v19
  %v26 = vpack.c.bf16 %v22, %v21
  %v27 = vld [vmem:[%s1] sm:$0xf]
  %v28 = vld [vmem:[%s1 + $0x4] sm:$0xf]
  %v29 = vld [vmem:[%s1 + $0x8] sm:$0xf]
  %v30 = vld [vmem:[%s1 + $0xc] sm:$0xf]
  %v31 = vld [vmem:[%s1 + $0x10] sm:$0xf]
  %v32 = vld [vmem:[%s1 + $0x14] sm:$0xf]
  %v33 = vld [vmem:[%s1 + $0x18] sm:$0xf]
  %v34 = vld [vmem:[%s1 + $0x1c] sm:$0xf]
  %v35 = vld [vmem:[%s2] sm:$0x1]
  %v37 = vperm.slane %v35, 0
  %v47 = vunpack.c.l.b16 %v27
  %v48 = vunpack.c.l.b16 %v28
  %v49 = vunpack.c.l.b16 %v29
  %v50 = vunpack.c.l.b16 %v30
  %v51 = vunpack.c.l.b16 %v31
  %v52 = vunpack.c.l.b16 %v32
  %v53 = vunpack.c.l.b16 %v33
  %v54 = vunpack.c.l.b16 %v34
  %v55 = vpack.c.b16 %v48, %v47
  %v56 = vpack.c.b16 %v50, %v49
  %v57 = vpack.c.b16 %v52, %v51
  %v58 = vpack.c.b16 %v54, %v53
  %vm63 = vcmask 523264
  %v65 = vsel %vm63, %v23, 0
  %v68 = vsel %vm63, %v24, 0
  %v71 = vsel %vm63, %v25, 0
  %v74 = vsel %vm63, %v26, 0
  %76 = vmatpush.bf16.msra.mxu0 0
  %77 = vmatpush.bf16.msra.mxu0 0
  %78 = vmatpush.bf16.msra.mxu0 0
  %79 = vmatpush.bf16.msra.mxu0 0
  %80 = vmatpush.bf16.msra.mxu0 %v58
  %81 = vmatpush.bf16.msra.mxu0 %v57
  %82 = vmatpush.bf16.msra.mxu0 %v56
  %83 = vmatpush.bf16.msra.mxu0 %v55
  %84 = vmatmul.bf16.gmra.mxu0 %v65
  %v85 = vpop.f32.mrf.mxu0
  %v86 = vadd.f32 %v37, %v85
  %v87 = vpop.f32.mrf.mxu0
  %v88 = vadd.f32 %v37, %v87
  %89 = vmatmul.bf16.gmra.mxu0 %v68
  %v90 = vpop.f32.mrf.mxu0
  %v91 = vadd.f32 %v37, %v90
  %v92 = vpop.f32.mrf.mxu0
  %v93 = vadd.f32 %v37, %v92
  %94 = vmatmul.bf16.gmra.mxu0 %v71
  %v95 = vpop.f32.mrf.mxu0
  %v96 = vadd.f32 %v37, %v95
  %v97 = vpop.f32.mrf.mxu0
  %v98 = vadd.f32 %v37, %v97
  %99 = vmatmul.bf16.gmra.mxu0 %v74
  %v100 = vpop.f32.mrf.mxu0
  %v101 = vadd.f32 %v37, %v100
  %v102 = vpop.f32.mrf.mxu0
  %v103 = vadd.f32 %v37, %v102
  %104 = vdwg.mxu0
  %vm105 = vcmp.gt.f32.partialorder %v86, 0.0
  %vm106 = vcmp.gt.f32.partialorder %v88, 0.0
  %vm107 = vcmp.gt.f32.partialorder %v91, 0.0
  %vm108 = vcmp.gt.f32.partialorder %v93, 0.0
  %vm109 = vcmp.gt.f32.partialorder %v96, 0.0
  %vm110 = vcmp.gt.f32.partialorder %v98, 0.0
  %vm111 = vcmp.gt.f32.partialorder %v101, 0.0
  %vm112 = vcmp.gt.f32.partialorder %v103, 0.0
  %v113 = vmul.f32 %v86, 0.1
  %v114 = vmul.f32 %v88, 0.1
  %v115 = vmul.f32 %v91, 0.1
  %v116 = vmul.f32 %v93, 0.1
  %v117 = vmul.f32 %v96, 0.1
  %v118 = vmul.f32 %v98, 0.1
  %v119 = vmul.f32 %v101, 0.1
  %v120 = vmul.f32 %v103, 0.1
  %v121 = vsel %vm105, %v86, %v113
  %v122 = vsel %vm106, %v88, %v114
  %v123 = vsel %vm107, %v91, %v115
  %v124 = vsel %vm108, %v93, %v116
  %v125 = vsel %vm109, %v96, %v117
  %v126 = vsel %vm110, %v98, %v118
  %v127 = vsel %vm111, %v101, %v119
  %v128 = vsel %vm112, %v103, %v120
  %vm129 = vcmask 785408
  %130 = vst.msk [vmem:[%s3] sm:$0xff] %vm129, %v121
  %131 = vst.msk [vmem:[%s3 + $0x8] sm:$0xff] %vm129, %v122
  %132 = vst.msk [vmem:[%s3 + $0x10] sm:$0xff] %vm129, %v123
  %133 = vst.msk [vmem:[%s3 + $0x18] sm:$0xff] %vm129, %v124
  %134 = vst.msk [vmem:[%s3 + $0x20] sm:$0xff] %vm129, %v125
  %135 = vst.msk [vmem:[%s3 + $0x28] sm:$0xff] %vm129, %v126
  %136 = vst.msk [vmem:[%s3 + $0x30] sm:$0xff] %vm129, %v127
  %137 = vst.msk [vmem:[%s3 + $0x38] sm:$0xff] %vm129, %v128
  // Predicated region
  $region14: #{_lambda_.7} parent=0 // pred_check
    _
  $region15: #{_lambda_.7} parent=0 // pred_check_branch
    %139 = sbr.rel (0) target = $region17
  $region16: #{_lambda_.7} parent=0 // pred_region
    _
  $region17: #{_lambda_.7} parent=0 // pred_fallthru
    _
  // Predicated region
  $region18: #{_lambda_.7} parent=0 // pred_check
    _
  $region19: #{_lambda_.7} parent=0 // pred_check_branch
    %141 = sbr.rel (0) target = $region21
  $region20: #{_lambda_.7} parent=0 // pred_region
    _
  $region21: #{_lambda_.7} parent=0 // pred_fallthru
    _

// kernel: _lambda_.9
$region0: #{_lambda_.9}
  #allocation0 [shape = 'u32[]', space=smem, size = 0x4, offset = 0x4, fixed_abs, tag = 'smem constant byte address 0x4 - core index']
  #allocation1 [shape = 'u32[72,128]{1,0:T(1,128)}', space=vmem, size = 0x9000, scoped, tag = 'internal scratch']
  %s0 = inlined_call_operand.vmem [shape: f32[8,8,16], index: 0, kind: input, shape index: {}]
  %s1 = inlined_call_operand.vmem [shape: f32[8,8,16], index: 1, kind: input, shape index: {}]
  %s2 = inlined_call_operand.vmem [shape: bf16[8,16,16], index: 2, kind: input, shape index: {}]
  %s3 = inlined_call_operand.vmem [shape: bf16[8,16,1], index: 3, kind: input, shape index: {}]
  %s4 = inlined_call_operand.vmem [shape: bf16[8,1,16], index: 4, kind: input, shape index: {}]
  %s5 = inlined_call_operand.vmem [shape: f32[8,1,1], index: 5, kind: input, shape index: {}]
  %s6 = inlined_call_operand.hbm [shape: f32[2,8,8,8], index: 6, kind: output, shape index: {}]
  %s7 = sld [smem:[#allocation0]]
  $region57: #{_lambda_.9} parent=0
    _
  %s9 = ssub.s32 1, %s7
  %s10 = scalar_select 0, %s9, %s7
  $region1: #{_lambda_.9} parent=0
    #allocation2 [shape = 'u8[8192]{0}', space=vmem, size = 0x2000, scoped, tag = 'output window, operand 0']
    #allocation3 [shape = 's32[2]{0}', space=sflag, size = 0x8, scoped, tag = 'scoped memory for _lambda_.9']
    %11 = vsyncpa [#allocation3], 0
    %s12 = scalar_lea.sflag [#allocation3], 1
    %13 = vsyncpa %s12, 0
    loop: start=0, step=1, limit=18
    $region2: #{_lambda_.9} parent=1 // loop_pre_header
      _
    $region3: #{_lambda_.9} parent=1 // loop_header
      %s15 = sphi 0, %s19
      %p16 = scmp.ge.s32.totalorder %s15, 18
      %s22 = sphi 0, %s34
      %s23 = sphi 0, %s30
      %s24 = sphi 0, %s22
      %s25 = sphi 0, %s23
      %s26 = sphi 0, %s24
      %s27 = sphi 0, %s25
      %s37 = sphi 0, %s39
      %s40 = sphi 0, %s37
      %s41 = sphi 0, %s40
      %s57 = sphi 0, %s41
      %s63 = sphi 0, %s65
      %s66 = sphi 0, %s63
      %s67 = sphi 0, %s66
      %s83 = sphi 0, %s67
      %s89 = sphi 0, %s91
      %s92 = sphi 0, %s89
      %s93 = sphi 0, %s92
      %s109 = sphi 0, %s93
      %s115 = sphi 0, %s117
      %s118 = sphi 0, %s115
      %s119 = sphi 0, %s118
      %s135 = sphi 0, %s119
      %s141 = sphi 0, %s143
      %s144 = sphi 0, %s141
      %s145 = sphi 0, %s144
      %s161 = sphi 0, %s145
      %s167 = sphi 0, %s169
      %s170 = sphi 0, %s167
      %s171 = sphi 0, %s170
      %s187 = sphi 0, %s171
      %s195 = sphi 0, %s197
      %s198 = sphi 0, %s195
      %s199 = sphi 0, %s198
      %s215 = sphi 0, %s199
    $region4: #{_lambda_.9} parent=1 // loop_header_branch
      %18 = sbr.rel (%p16) target = $region8
    $region5: #{_lambda_.9} parent=1 // loop_body
      %s20 = ssub.s32 %s15, 1
      %s21 = ssub.s32 %s15, 2
      %s28 = sadd.s32 1, %s23
      %p29 = scmp.ge.s32.totalorder %s28, 8
      %s30 = scalar_select %p29, 0, %s28
      %s31 = sadd.s32 1, %s22
      %s32 = scalar_select %p29, %s31, %s22
      %p33 = scmp.ge.s32.totalorder %s32, 2
      %s34 = scalar_select %p33, 0, %s32
      %s35 = ssub.s32 %s22, %s34
      %p36 = scmp.eq.s32.totalorder %s35, 0
      %s38 = sadd.s32 %s37, 1
      %s39 = scalar_select %p36, %s37, %s38
      %p42 = pneg %p36
      %p43 = scmp.eq.s32.totalorder %s15, 15
      %p44 = por %p42, %p43
      %p45 = scmp.ne.s32.totalorder %s37, %s40
      %p46 = scmp.eq.s32.totalorder %s15, 0
      %p47 = por %p45, %p46
      %p48 = scmp.ne.s32.totalorder %s37, %s40
      %p49 = scmp.eq.s32.totalorder %s20, 15
      %p50 = por %p48, %p49
      %p51 = scmp.ne.s32.totalorder %s40, %s41
      %p52 = scmp.eq.s32.totalorder %s20, 0
      %p53 = por %p51, %p52
      %p54 = scmp.ne.s32.totalorder %s40, %s41
      %p55 = scmp.eq.s32.totalorder %s21, 15
      %p56 = por %p54, %p55
      %p58 = scmp.ne.s32.totalorder %s41, %s57
      %p59 = scmp.eq.s32.totalorder %s21, 0
      %p60 = por %p58, %p59
      %s61 = ssub.s32 %s22, %s34
      %p62 = scmp.eq.s32.totalorder %s61, 0
      %s64 = sadd.s32 %s63, 1
      %s65 = scalar_select %p62, %s63, %s64
      %p68 = pneg %p62
      %p69 = scmp.eq.s32.totalorder %s15, 15
      %p70 = por %p68, %p69
      %p71 = scmp.ne.s32.totalorder %s63, %s66
      %p72 = scmp.eq.s32.totalorder %s15, 0
      %p73 = por %p71, %p72
      %p74 = scmp.ne.s32.totalorder %s63, %s66
      %p75 = scmp.eq.s32.totalorder %s20, 15
      %p76 = por %p74, %p75
      %p77 = scmp.ne.s32.totalorder %s66, %s67
      %p78 = scmp.eq.s32.totalorder %s20, 0
      %p79 = por %p77, %p78
      %p80 = scmp.ne.s32.totalorder %s66, %s67
      %p81 = scmp.eq.s32.totalorder %s21, 15
      %p82 = por %p80, %p81
      %p84 = scmp.ne.s32.totalorder %s67, %s83
      %p85 = scmp.eq.s32.totalorder %s21, 0
      %p86 = por %p84, %p85
      %s87 = ssub.s32 %s23, %s30
      %p88 = scmp.eq.s32.totalorder %s87, 0
      %s90 = sadd.s32 %s89, 1
      %s91 = scalar_select %p88, %s89, %s90
      %p94 = pneg %p88
      %p95 = scmp.eq.s32.totalorder %s15, 15
      %p96 = por %p94, %p95
      %p97 = scmp.ne.s32.totalorder %s89, %s92
      %p98 = scmp.eq.s32.totalorder %s15, 0
      %p99 = por %p97, %p98
      %p100 = scmp.ne.s32.totalorder %s89, %s92
      %p101 = scmp.eq.s32.totalorder %s20, 15
      %p102 = por %p100, %p101
      %p103 = scmp.ne.s32.totalorder %s92, %s93
      %p104 = scmp.eq.s32.totalorder %s20, 0
      %p105 = por %p103, %p104
      %p106 = scmp.ne.s32.totalorder %s92, %s93
      %p107 = scmp.eq.s32.totalorder %s21, 15
      %p108 = por %p106, %p107
      %p110 = scmp.ne.s32.totalorder %s93, %s109
      %p111 = scmp.eq.s32.totalorder %s21, 0
      %p112 = por %p110, %p111
      %s113 = ssub.s32 %s23, %s30
      %p114 = scmp.eq.s32.totalorder %s113, 0
      %s116 = sadd.s32 %s115, 1
      %s117 = scalar_select %p114, %s115, %s116
      %p120 = pneg %p114
      %p121 = scmp.eq.s32.totalorder %s15, 15
      %p122 = por %p120, %p121
      %p123 = scmp.ne.s32.totalorder %s115, %s118
      %p124 = scmp.eq.s32.totalorder %s15, 0
      %p125 = por %p123, %p124
      %p126 = scmp.ne.s32.totalorder %s115, %s118
      %p127 = scmp.eq.s32.totalorder %s20, 15
      %p128 = por %p126, %p127
      %p129 = scmp.ne.s32.totalorder %s118, %s119
      %p130 = scmp.eq.s32.totalorder %s20, 0
      %p131 = por %p129, %p130
      %p132 = scmp.ne.s32.totalorder %s118, %s119
      %p133 = scmp.eq.s32.totalorder %s21, 15
      %p134 = por %p132, %p133
      %p136 = scmp.ne.s32.totalorder %s119, %s135
      %p137 = scmp.eq.s32.totalorder %s21, 0
      %p138 = por %p136, %p137
      %s139 = ssub.s32 %s23, %s30
      %p140 = scmp.eq.s32.totalorder %s139, 0
      %s142 = sadd.s32 %s141, 1
      %s143 = scalar_select %p140, %s141, %s142
      %p146 = pneg %p140
      %p147 = scmp.eq.s32.totalorder %s15, 15
      %p148 = por %p146, %p147
      %p149 = scmp.ne.s32.totalorder %s141, %s144
      %p150 = scmp.eq.s32.totalorder %s15, 0
      %p151 = por %p149, %p150
      %p152 = scmp.ne.s32.totalorder %s141, %s144
      %p153 = scmp.eq.s32.totalorder %s20, 15
      %p154 = por %p152, %p153
      %p155 = scmp.ne.s32.totalorder %s144, %s145
      %p156 = scmp.eq.s32.totalorder %s20, 0
      %p157 = por %p155, %p156
      %p158 = scmp.ne.s32.totalorder %s144, %s145
      %p159 = scmp.eq.s32.totalorder %s21, 15
      %p160 = por %p158, %p159
      %p162 = scmp.ne.s32.totalorder %s145, %s161
      %p163 = scmp.eq.s32.totalorder %s21, 0
      %p164 = por %p162, %p163
      %s165 = ssub.s32 %s23, %s30
      %p166 = scmp.eq.s32.totalorder %s165, 0
      %s168 = sadd.s32 %s167, 1
      %s169 = scalar_select %p166, %s167, %s168
      %p172 = pneg %p166
      %p173 = scmp.eq.s32.totalorder %s15, 15
      %p174 = por %p172, %p173
      %p175 = scmp.ne.s32.totalorder %s167, %s170
      %p176 = scmp.eq.s32.totalorder %s15, 0
      %p177 = por %p175, %p176
      %p178 = scmp.ne.s32.totalorder %s167, %s170
      %p179 = scmp.eq.s32.totalorder %s20, 15
      %p180 = por %p178, %p179
      %p181 = scmp.ne.s32.totalorder %s170, %s171
      %p182 = scmp.eq.s32.totalorder %s20, 0
      %p183 = por %p181, %p182
      %p184 = scmp.ne.s32.totalorder %s170, %s171
      %p185 = scmp.eq.s32.totalorder %s21, 15
      %p186 = por %p184, %p185
      %p188 = scmp.ne.s32.totalorder %s171, %s187
      %p189 = scmp.eq.s32.totalorder %s21, 0
      %p190 = por %p188, %p189
      %s191 = ssub.s32 %s22, %s34
      %s192 = ssub.s32 %s23, %s30
      %s193 = sor.u32 %s191, %s192
      %p194 = scmp.eq.s32.totalorder %s193, 0
      %s196 = sadd.s32 %s195, 1
      %s197 = scalar_select %p194, %s195, %s196
      %p200 = pneg %p194
      %p201 = scmp.eq.s32.totalorder %s15, 15
      %p202 = por %p200, %p201
      %p203 = scmp.ne.s32.totalorder %s195, %s198
      %p204 = scmp.eq.s32.totalorder %s15, 0
      %p205 = por %p203, %p204
      %p206 = scmp.ne.s32.totalorder %s195, %s198
      %p207 = scmp.eq.s32.totalorder %s20, 15
      %p208 = por %p206, %p207
      %p209 = scmp.ne.s32.totalorder %s198, %s199
      %p210 = scmp.eq.s32.totalorder %s20, 0
      %p211 = por %p209, %p210
      %p212 = scmp.ne.s32.totalorder %s198, %s199
      %p213 = scmp.eq.s32.totalorder %s21, 15
      %p214 = por %p212, %p213
      %p216 = scmp.ne.s32.totalorder %s199, %s215
      %p217 = scmp.eq.s32.totalorder %s21, 0
      %p218 = por %p216, %p217
      %p219 = scmp.le.s32.totalorder 1, %s15
      %p220 = scmp.lt.s32.totalorder %s15, 17
      %p221 = pnand %p219, %p220
      %p222 = pneg %p221
      // Predicated region
      $region9: #{_lambda_.9} parent=5 // pred_check
        _
      $region10: #{_lambda_.9} parent=5 // pred_check_branch
        %224 = sbr.rel (%p221) target = $region12
      $region11: #{_lambda_.9} parent=5 // pred_region
        %s225 = ssub.s32 %s15, 1
      $region12: #{_lambda_.9} parent=5 // pred_fallthru
        _
      %p226 = scmp.lt.s32.totalorder %s15, 16
      // Predicated region
      $region13: #{_lambda_.9} parent=5 // pred_check
        %p227 = pneg %p226
      $region14: #{_lambda_.9} parent=5 // pred_check_branch
        %229 = sbr.rel (%p227) target = $region16
      $region15: #{_lambda_.9} parent=5 // pred_region
        // Predicated region
        $region17: #{_lambda_.9} parent=15 // pred_check
          %p230 = pneg %p47
        $region18: #{_lambda_.9} parent=15 // pred_check_branch
          %232 = sbr.rel (%p230) target = $region20
        $region19: #{_lambda_.9} parent=15 // pred_region
          %p233 = scmp.lt.s32.totalorder %s22, 7
          %s234 = scalar_select %p233, %s22, 7
          %s235 = smul.addr %s234, 8
          %s236 = scalar_lea.vmem %s0, %s235
        $region20: #{_lambda_.9} parent=15 // pred_fallthru
          _
        // Predicated region
        $region21: #{_lambda_.9} parent=15 // pred_check
          %p237 = pneg %p73
        $region22: #{_lambda_.9} parent=15 // pred_check_branch
          %239 = sbr.rel (%p237) target = $region24
        $region23: #{_lambda_.9} parent=15 // pred_region
          %p240 = scmp.lt.s32.totalorder %s22, 7
          %s241 = scalar_select %p240, %s22, 7
          %s242 = smul.addr %s241, 8
          %s243 = scalar_lea.vmem %s1, %s242
        $region24: #{_lambda_.9} parent=15 // pred_fallthru
          _
        // Predicated region
        $region25: #{_lambda_.9} parent=15 // pred_check
          %p244 = pneg %p99
        $region26: #{_lambda_.9} parent=15 // pred_check_branch
          %246 = sbr.rel (%p244) target = $region28
        $region27: #{_lambda_.9} parent=15 // pred_region
          %p247 = scmp.lt.s32.totalorder %s23, 7
          %s248 = scalar_select %p247, %s23, 7
          %s249 = smul.addr %s248, 2
          %s250 = smul.addr %s249, 4
          %s251 = scalar_lea.vmem %s2, %s250
        $region28: #{_lambda_.9} parent=15 // pred_fallthru
          _
        // Predicated region
        $region29: #{_lambda_.9} parent=15 // pred_check
          %p252 = pneg %p125
        $region30: #{_lambda_.9} parent=15 // pred_check_branch
          %254 = sbr.rel (%p252) target = $region32
        $region31: #{_lambda_.9} parent=15 // pred_region
          %p255 = scmp.lt.s32.totalorder %s23, 7
          %s256 = scalar_select %p255, %s23, 7
          %s257 = smul.addr %s256, 2
          %s258 = smul.addr %s257, 4
          %s259 = scalar_lea.vmem %s3, %s258
        $region32: #{_lambda_.9} parent=15 // pred_fallthru
          _
        // Predicated region
        $region33: #{_lambda_.9} parent=15 // pred_check
          %p260 = pneg %p151
        $region34: #{_lambda_.9} parent=15 // pred_check_branch
          %262 = sbr.rel (%p260) target = $region36
        $region35: #{_lambda_.9} parent=15 // pred_region
          %p263 = scmp.lt.s32.totalorder %s23, 7
          %s264 = scalar_select %p263, %s23, 7
          %s265 = scalar_lea.vmem %s4, %s264
        $region36: #{_lambda_.9} parent=15 // pred_fallthru
          _
        // Predicated region
        $region37: #{_lambda_.9} parent=15 // pred_check
          %p266 = pneg %p177
        $region38: #{_lambda_.9} parent=15 // pred_check_branch
          %268 = sbr.rel (%p266) target = $region40
        $region39: #{_lambda_.9} parent=15 // pred_region
          %p269 = scmp.lt.s32.totalorder %s23, 7
          %s270 = scalar_select %p269, %s23, 7
          %s271 = scalar_lea.vmem %s5, %s270
        $region40: #{_lambda_.9} parent=15 // pred_fallthru
          _
      $region16: #{_lambda_.9} parent=5 // pred_fallthru
        _
      %p272 = scmp.le.s32.totalorder 1, %s15
      %p273 = scmp.lt.s32.totalorder %s15, 17
      %p274 = pnand %p272, %p273
      %p275 = pneg %p274
      // Predicated region
      $region41: #{_lambda_.9} parent=5 // pred_check
        _
      $region42: #{_lambda_.9} parent=5 // pred_check_branch
        %277 = sbr.rel (%p274) target = $region44
      $region43: #{_lambda_.9} parent=5 // pred_region
        %s278 = ssub.s32 %s15, 1
        %p279 = scmp.lt.s32.totalorder %s24, 7
        %s280 = scalar_select %p279, %s24, 7
        %s281 = smul.addr %s280, 8
        %s282 = scalar_lea.vmem %s0, %s281
        %p283 = pneg %p53
        %p284 = pneg %p50
        %p285 = scmp.lt.s32.totalorder %s24, 7
        %s286 = scalar_select %p285, %s24, 7
        %s287 = smul.addr %s286, 8
        %s288 = scalar_lea.vmem %s1, %s287
        %p289 = pneg %p79
        %p290 = pneg %p76
        %p291 = scmp.lt.s32.totalorder %s25, 7
        %s292 = scalar_select %p291, %s25, 7
        %s293 = smul.addr %s292, 2
        %s294 = smul.addr %s293, 4
        %s295 = scalar_lea.vmem %s2, %s294
        %p296 = pneg %p105
        %p297 = pneg %p102
        %p298 = scmp.lt.s32.totalorder %s25, 7
        %s299 = scalar_select %p298, %s25, 7
        %s300 = smul.addr %s299, 2
        %s301 = smul.addr %s300, 4
        %s302 = scalar_lea.vmem %s3, %s301
        %p303 = pneg %p131
        %p304 = pneg %p128
        %p305 = scmp.lt.s32.totalorder %s25, 7
        %s306 = scalar_select %p305, %s25, 7
        %s307 = scalar_lea.vmem %s4, %s306
        %p308 = pneg %p157
        %p309 = pneg %p154
        %p310 = scmp.lt.s32.totalorder %s25, 7
        %s311 = scalar_select %p310, %s25, 7
        %s312 = scalar_lea.vmem %s5, %s311
        %p313 = pneg %p183
        %p314 = pneg %p180
        %p315 = pneg %p211
        %p316 = pneg %p208
        %s317 = sand.u32 %s198, 1
        %s318 = scalar_lea.sflag [#allocation3], %s317
        %s319 = sand.u32 %s198, 1
        %s320 = smul.addr %s319, 8
        %s321 = scalar_lea.vmem [#allocation2], %s320
        %p322 = scmp.lt.s32.totalorder %s24, 7
        %s323 = scalar_select %p322, %s24, 7
        %s324 = smul.addr %s323, 8
        %s325 = scalar_lea.vmem %s0, %s324
        %p326 = scmp.lt.s32.totalorder %s24, 7
        %s327 = scalar_select %p326, %s24, 7
        %s328 = smul.addr %s327, 8
        %s329 = scalar_lea.vmem %s1, %s328
        %p330 = scmp.lt.s32.totalorder %s25, 7
        %s331 = scalar_select %p330, %s25, 7
        %s332 = smul.addr %s331, 2
        %s333 = smul.addr %s332, 4
        %s334 = scalar_lea.vmem %s2, %s333
        %p335 = scmp.lt.s32.totalorder %s25, 7
        %s336 = scalar_select %p335, %s25, 7
        %s337 = smul.addr %s336, 2
        %s338 = smul.addr %s337, 4
        %s339 = scalar_lea.vmem %s3, %s338
        %p340 = scmp.lt.s32.totalorder %s25, 7
        %s341 = scalar_select %p340, %s25, 7
        %s342 = scalar_lea.vmem %s4, %s341
        %p343 = scmp.lt.s32.totalorder %s25, 7
        %s344 = scalar_select %p343, %s25, 7
        %s345 = scalar_lea.vmem %s5, %s344
        %v347 = vld [vmem:[%s325] sm:$0xff]
        %v348 = vpack.c.bf16 %v347, %v347
        %v349 = vld [vmem:[%s329] sm:$0xff]
        %v350 = vpack.c.bf16 %v349, %v349
        %v351 = vld [vmem:[%s334] sm:$0xf]
        %v352 = vld [vmem:[%s334 + $0x4] sm:$0xf]
        %v355 = vunpack.c.l.b16 %v351
        %v356 = vunpack.c.l.b16 %v352
        %v357 = vpack.c.b16 %v356, %v355
        %vm359 = vcmask 130048
        %v361 = vsel %vm359, %v350, 0
        %363 = vmatpush.bf16.msra.mxu0 0
        %364 = vmatpush.bf16.msra.mxu0 0
        %365 = vmatpush.bf16.msra.mxu0 0
        %366 = vmatpush.bf16.msra.mxu0 0
        %367 = vmatpush.bf16.msra.mxu0 0
        %368 = vmatpush.bf16.msra.mxu0 0
        %369 = vmatpush.bf16.msra.mxu0 0
        %370 = vmatpush.bf16.msra.mxu0 %v357
        %371 = vmatmul.bf16.gmra.mxu0 %v361
        %v372 = vpop.f32.mrf.mxu0
        %v373 = vadd.f32 0.0, %v372
        %v374 = vpop.f32.mrf.mxu0
        %375 = vdwg.mxu0
        %v376 = vpack.c.bf16 %v373, %v373
        %v377 = vld [vmem:[%s339] sm:$0xf]
        %v378 = vld [vmem:[%s339 + $0x4] sm:$0xf]
        %v381 = vunpack.c.l.b16 %v377
        %v382 = vunpack.c.l.b16 %v378
        %v383 = vpack.c.b16 %v382, %v381
        %385 = vmatpush.bf16.msra.mxu0 0
        %386 = vmatpush.bf16.msra.mxu0 0
        %387 = vmatpush.bf16.msra.mxu0 0
        %388 = vmatpush.bf16.msra.mxu0 0
        %389 = vmatpush.bf16.msra.mxu0 0
        %390 = vmatpush.bf16.msra.mxu0 0
        %391 = vmatpush.bf16.msra.mxu0 0
        %392 = vmatpush.bf16.msra.mxu0 %v383
        %393 = vmatmul.bf16.gmra.mxu0 %v361
        %v394 = vpop.f32.mrf.mxu0
        %v395 = vadd.f32 0.0, %v394
        %v396 = vpop.f32.mrf.mxu0
        %397 = vdwg.mxu0
        %v398 = vld [vmem:[%s342] sm:$0x1]
        %v400 = vsel %vm359, %v398, 0
        %v403 = vsel %vm359, %v348, 0
        %405 = vmatpush.bf16.xpose.msra.mxu0 0
        %406 = vmatpush.bf16.xpose.msra.mxu0 0
        %407 = vmatpush.bf16.xpose.msra.mxu0 0
        %408 = vmatpush.bf16.xpose.msra.mxu0 0
        %409 = vmatpush.bf16.xpose.msra.mxu0 0
        %410 = vmatpush.bf16.xpose.msra.mxu0 0
        %411 = vmatpush.bf16.xpose.msra.mxu0 0
        %412 = vmatpush.bf16.xpose.msra.mxu0 %v403
        %413 = vmatmul.bf16.gmra.mxu0 %v400
        %v414 = vpop.f32.mrf.mxu0
        %v415 = vadd.f32 0.0, %v414
        %v416 = vpop.f32.mrf.mxu0
        %417 = vdwg.mxu0
        %419 = vset.pattern.permute.xlu0 0
        %420 = vperm.xlu0 %419, %v395
        %v421 = vpop.permute.xlu0 %420
        %v424 = vsel %vm359, %v376, 0
        %426 = vmatpush.bf16.xpose.msra.mxu0 0
        %427 = vmatpush.bf16.xpose.msra.mxu0 0
        %428 = vmatpush.bf16.xpose.msra.mxu0 0
        %429 = vmatpush.bf16.xpose.msra.mxu0 0
        %430 = vmatpush.bf16.xpose.msra.mxu0 0
        %431 = vmatpush.bf16.xpose.msra.mxu0 0
        %432 = vmatpush.bf16.xpose.msra.mxu0 0
        %433 = vmatpush.bf16.xpose.msra.mxu0 %v403
        %434 = vmatmul.bf16.gmra.mxu0 %v424
        %v435 = vpop.f32.mrf.mxu0
        %v436 = vadd.f32 %v421, %v435
        %v437 = vpop.f32.mrf.mxu0
        %438 = vdwg.mxu0
        %v439 = vperm.slane %v415, 0
        %v440 = vadd.f32 %v436, %v439
        %v441 = vld [vmem:[%s345] sm:$0x1]
        %v443 = vperm.slane %v441, 0
        %444 = vset.pattern.permute.xlu0 0
        %445 = vperm.xlu0 %444, %v443
        %v446 = vpop.permute.xlu0 %445
        %v448 = vadd.f32 %v440, %v446
        %vm449 = vcmask 64512
        %450 = vst.msk [vmem:[%s321] sm:$0xff] %vm449, %v448
        %s451 = sand.u32 %s198, 1
        %s452 = scalar_lea.sflag [#allocation3], %s451
        %s453 = sand.u32 %s198, 1
        %s454 = smul.addr %s453, 8
        %s455 = scalar_lea.vmem [#allocation2], %s454
        // Predicated region
        $region45: #{_lambda_.9} parent=43 // pred_check
          %p456 = pneg %p208
        $region46: #{_lambda_.9} parent=43 // pred_check_branch
          %458 = sbr.rel (%p456) target = $region48
        $region47: #{_lambda_.9} parent=43 // pred_region
          %460 = vsyncadd %s452, 0
          %s461 = smul.addr %s24, 8
          %s462 = sadd.s32 %s25, %s461
          %s463 = smul.addr %s462, 8
          %s464 = scalar_lea.hbm %s6, %s463
          %s466 = sshll.u32 %s455, 4
          %s467 = int_to_ptr.vmem [resolvable:$true] %s466
          %s468 = sshll.u32 %s464, 4
          %s469 = int_to_ptr.hbm [resolvable:$true] %s468
          %471 = dma.vmem_to_hbm [thread:$0]  %s467, 128, %s469, %s452
        $region48: #{_lambda_.9} parent=43 // pred_fallthru
          _
      $region44: #{_lambda_.9} parent=5 // pred_fallthru
        _
      %p472 = scmp.le.s32.totalorder 2, %s15
      // Predicated region
      $region49: #{_lambda_.9} parent=5 // pred_check
        %p473 = pneg %p472
      $region50: #{_lambda_.9} parent=5 // pred_check_branch
        %475 = sbr.rel (%p473) target = $region52
      $region51: #{_lambda_.9} parent=5 // pred_region
        %s476 = ssub.s32 %s15, 2
        // Predicated region
        $region53: #{_lambda_.9} parent=51 // pred_check
          %p477 = pneg %p214
        $region54: #{_lambda_.9} parent=51 // pred_check_branch
          %479 = sbr.rel (%p477) target = $region56
        $region55: #{_lambda_.9} parent=51 // pred_region
          %s480 = sand.u32 %s199, 1
          %s481 = scalar_lea.sflag [#allocation3], %s480
          %s482 = sand.u32 %s199, 1
          %s483 = smul.addr %s482, 8
          %s484 = scalar_lea.vmem [#allocation2], %s483
          %486 = dma.done %s481, 128
        $region56: #{_lambda_.9} parent=51 // pred_fallthru
          _
      $region52: #{_lambda_.9} parent=5 // pred_fallthru
        _
    $region6: #{_lambda_.9} parent=1 // loop_footer
      %s19 = sadd.s32 1, %s15
    $region7: #{_lambda_.9} parent=1 // loop_footer_branch
      %14 = sbr.rel target = $region3
    $region8: #{_lambda_.9} parent=1 // loop_exit
      _
    %487 = vsyncpa [#allocation3], 1
    %s488 = scalar_lea.sflag [#allocation3], 1
    %489 = vsyncpa %s488, 1

</llo_original>
